<compile_context>
chip_gen: v6e
topology: v6e:2x2x1
jax: 0.10.0
libtpu: 0.0.40
codegen_flags: <defaults>
</compile_context>

<pallas_src>
import math

import jax
import jax.numpy as jnp
from jax.experimental import pallas as pl
from jax.experimental.pallas import tpu as pltpu


# ---------------------------------------------------------------------------
# Kernel
# ---------------------------------------------------------------------------
def _sage_layer_kernel(adj_ref, xk_ref, xs_ref, invdeg_ref,
                       w_self_ref, w_neigh_ref, o_ref, acc_ref):
    """One SageConv layer fused with ReLU, tiled over (row tile i, adj tile k).

    adj_ref:    (TM, TK)      bf16 adjacency tile
    xk_ref:     (TK, F_in)    bf16 features for the contraction
    xs_ref:     (TM, F_in)    f32  features for the self term (rows i)
    invdeg_ref: (TM, 1)       f32  1 / (deg + 1) for rows i
    w_self_ref: (F_in, F_out) f32
    w_neigh_ref:(F_in, F_out) f32
    o_ref:      (TM, F_out)   f32 output tile (resident across k)
    acc_ref:    (TM, F_in)    f32 aggregation accumulator (scratch)
    """
    k = pl.program_id(1)

    @pl.when(k == 0)
    def _():
        acc_ref[...] = jnp.zeros_like(acc_ref)

    # Neighbor aggregation on the MXU: bf16 x bf16 -> f32 accumulate.
    acc_ref[...] += jnp.dot(adj_ref[...], xk_ref[...],
                            preferred_element_type=jnp.float32)

    @pl.when(k == pl.num_programs(1) - 1)
    def _():
        # Degree normalization was hoisted to the wrapper -> just a multiply.
        neigh = acc_ref[...] * invdeg_ref[...]
        # concat([x, neigh], -1) @ W.T == x @ W_self + neigh @ W_neigh
        out = (jnp.dot(xs_ref[...], w_self_ref[...],
                       preferred_element_type=jnp.float32)
               + jnp.dot(neigh, w_neigh_ref[...],
                         preferred_element_type=jnp.float32))
        o_ref[...] = jnp.maximum(out, 0.0).astype(o_ref.dtype)  # fused ReLU


def _sage_layer(x_f32, adj_bf16, inv_deg, w_self, w_neigh, *, tm, tk):
    """Run one tiled SageConv+ReLU layer. All inputs already padded."""
    n_pad = adj_bf16.shape[0]
    f_in = x_f32.shape[1]
    f_out = w_self.shape[1]
    assert n_pad % tm == 0 and n_pad % tk == 0

    x_bf16 = x_f32.astype(jnp.bfloat16)  # contraction copy (halves x DMA bytes)

    grid = (n_pad // tm, n_pad // tk)
    return pl.pallas_call(
        _sage_layer_kernel,
        out_shape=jax.ShapeDtypeStruct((n_pad, f_out), jnp.float32),
        grid_spec=pltpu.PrefetchScalarGridSpec(
            num_scalar_prefetch=0,
            grid=grid,
            in_specs=[
                pl.BlockSpec((tm, tk), lambda i, k: (i, k)),        # adj tile
                pl.BlockSpec((tk, f_in), lambda i, k: (k, 0)),      # x (contraction)
                pl.BlockSpec((tm, f_in), lambda i, k: (i, 0)),      # x (self term)
                pl.BlockSpec((tm, 1), lambda i, k: (i, 0)),         # inv_deg
                pl.BlockSpec((f_in, f_out), lambda i, k: (0, 0)),   # w_self (resident)
                pl.BlockSpec((f_in, f_out), lambda i, k: (0, 0)),   # w_neigh (resident)
            ],
            out_specs=pl.BlockSpec((tm, f_out), lambda i, k: (i, 0)),
            scratch_shapes=[pltpu.VMEM((tm, f_in), jnp.float32)],
        ),
        compiler_params=pltpu.CompilerParams(
            dimension_semantics=("parallel", "arbitrary"),
            vmem_limit_bytes=48 * 1024 * 1024,
        ),
    )(adj_bf16, x_bf16, x_f32, inv_deg, w_self, w_neigh)


# ---------------------------------------------------------------------------
# Wrapper (padding, degree hoist, two layers)
# ---------------------------------------------------------------------------
def _round_up(x, m):
    return ((x + m - 1) // m) * m


def _pad2(a, rows, cols):
    return jnp.pad(a, ((0, rows - a.shape[0]), (0, cols - a.shape[1])))


def sage_en2_forward(x, adj, params, *, tm=256, tk=512):
    """Sage_En2.forward (eval): relu(sage1) -> dropout(id) -> relu(sage2) -> dropout(id)."""
    # TODO(synk): F.dropout is identity here (eval mode); training-mode dropout
    # would need an in-kernel PRNG mask (pltpu.prng_random_bits).
    n, nfeat = x.shape
    nhid = params["w1_self"].shape[1]
    nembed = params["w2_self"].shape[1]

    # Pad nodes to the tile grid and features to lane-dense multiples of 128.
    n_pad = _round_up(n, math.lcm(tm, tk))
    f_in = _round_up(nfeat, 128)
    f_hid = _round_up(nhid, 128)
    f_emb = _round_up(nembed, 128)

    x_p = _pad2(x.astype(jnp.float32), n_pad, f_in)
    adj_p = _pad2(adj.astype(jnp.float32), n_pad, n_pad)

    # Degree normalization hoisted out of the kernels and shared by both layers.
    inv_deg = 1.0 / (jnp.sum(adj_p, axis=1, keepdims=True) + 1.0)   # (n_pad, 1) f32
    adj_bf16 = adj_p.astype(jnp.bfloat16)                           # 0/1 values -> exact

    w1s = _pad2(params["w1_self"], f_in, f_hid)
    w1n = _pad2(params["w1_neigh"], f_in, f_hid)
    w2s = _pad2(params["w2_self"], f_hid, f_emb)
    w2n = _pad2(params["w2_neigh"], f_hid, f_emb)

    h = _sage_layer(x_p, adj_bf16, inv_deg, w1s, w1n, tm=tm, tk=tk)
    h = _sage_layer(h, adj_bf16, inv_deg, w2s, w2n, tm=tm, tk=tk)
    return h[:n, :nembed]


# ---------------------------------------------------------------------------
# Params & reference
# ---------------------------------------------------------------------------
def init_params(key, nfeat, nhid, nembed):
    """Mimic nn.init.normal_ on proj.weight (std=1, no bias).

    PyTorch proj.weight has shape (out, 2*in); the first `in` columns multiply
    `features`, the last `in` columns multiply `neigh_feature`.  We store the
    transpose, split into the two (in, out) halves.
    """
    k1, k2 = jax.random.split(key)
    w1 = jax.random.normal(k1, (nhid, 2 * nfeat), dtype=jnp.float32)   # torch layout
    w2 = jax.random.normal(k2, (nembed, 2 * nhid), dtype=jnp.float32)
    return {
        "w1_self": jnp.transpose(w1[:, :nfeat]),    # (nfeat, nhid)
        "w1_neigh": jnp.transpose(w1[:, nfeat:]),   # (nfeat, nhid)
        "w2_self": jnp.transpose(w2[:, :nhid]),     # (nhid, nembed)
        "w2_neigh": jnp.transpose(w2[:, nhid:]),    # (nhid, nembed)
    }


def sage_en2_reference(x, adj, params):
    """Pure-JAX f32 reference matching the PyTorch forward (eval mode)."""
    def layer(feat, w_self, w_neigh):
        neigh = (adj @ feat) / (jnp.sum(adj, axis=1, keepdims=True) + 1.0)
        return jax.nn.relu(feat @ w_self + neigh @ w_neigh)

    h = layer(x, params["w1_self"], params["w1_neigh"])
    h = layer(h, params["w2_self"], params["w2_neigh"])
    return h


# ---------------------------------------------------------------------------
# Test
# ---------------------------------------------------------------------------
if __name__ == "__main__":
    # Small shapes consistent with the module: N nodes, nfeat input features.
    N, nfeat, nhid, nembed = 16, 8, 32, 16

    key = jax.random.PRNGKey(0)
    k_x, k_adj, k_p = jax.random.split(key, 3)

    x = jax.random.normal(k_x, (N, nfeat), dtype=jnp.float32)
    adj = (jax.random.uniform(k_adj, (N, N)) < 0.3).astype(jnp.float32)  # dense 0/1 graph

    params = init_params(k_p, nfeat, nhid, nembed)

    out = jax.block_until_ready(sage_en2_forward(x, adj, params))
    ref = sage_en2_reference(x, adj, params)

    assert out.shape == (N, nembed), out.shape
    # bf16 adjacency is exact; bf16 feature operand of the aggregation matmul
    # (f32 accumulation) loosens tolerance slightly vs the pure-f32 reference.
    assert jnp.allclose(out, ref, atol=5e-2, rtol=5e-2), "mismatch vs reference"

    print("KERNEL_OK")
</pallas_src>

<mosaic_0001>
module attributes {stable_mosaic.version = 11 : i64} {
  func.func @_sage_layer_kernel(%arg0: i32, %arg1: i32, %arg2: memref<256x512xbf16, #tpu.memory_space<vmem>>, %arg3: memref<512x128xbf16, #tpu.memory_space<vmem>>, %arg4: memref<256x128xf32, #tpu.memory_space<vmem>>, %arg5: memref<256x1xf32, #tpu.memory_space<vmem>>, %arg6: memref<128x128xf32, #tpu.memory_space<vmem>>, %arg7: memref<128x128xf32, #tpu.memory_space<vmem>>, %arg8: memref<256x128xf32, #tpu.memory_space<vmem>>, %arg9: memref<256x128xf32, #tpu.memory_space<vmem>>) attributes {dimension_semantics = [#tpu.dimension_semantics<parallel>, #tpu.dimension_semantics<arbitrary>], iteration_bounds = array<i64: 2, 1>, scalar_prefetch = 0 : i64, scratch_operands = 1 : i64, tpu.core_type = #tpu.core_type<tc>, window_params = [{transform_indices = @transform_0, window_bounds = array<i64: 256, 512>}, {transform_indices = @transform_1, window_bounds = array<i64: 512, 128>}, {transform_indices = @transform_2, window_bounds = array<i64: 256, 128>}, {transform_indices = @transform_3, window_bounds = array<i64: 256, 1>}, {pipeline_mode = #tpu.pipeline_mode<synchronous>, transform_indices = @transform_4, window_bounds = array<i64: 128, 128>}, {pipeline_mode = #tpu.pipeline_mode<synchronous>, transform_indices = @transform_5, window_bounds = array<i64: 128, 128>}, {transform_indices = @transform_6, window_bounds = array<i64: 256, 128>}]} {
    %c0_i32 = arith.constant 0 : i32
    %0 = arith.cmpi eq, %arg1, %c0_i32 : i32
    %1 = arith.extui %0 : i1 to i32
    %c0_i32_0 = arith.constant 0 : i32
    %2 = arith.cmpi ne, %1, %c0_i32_0 : i32
    scf.if %2 {
      %cst_10 = arith.constant 0.000000e+00 : f32
      %12 = vector.broadcast %cst_10 : f32 to vector<256x128xf32>
      %c0_11 = arith.constant 0 : index
      %c0_12 = arith.constant 0 : index
      %13 = vector.load %arg9[%c0_11, %c0_12] : memref<256x128xf32, #tpu.memory_space<vmem>>, vector<256x128xf32>
      tpu.vector_store %arg9[%c0_11, %c0_12], %12 {strides = array<i32>} : memref<256x128xf32, #tpu.memory_space<vmem>>, vector<256x128xf32>,
    } else {
    }
    %c0 = arith.constant 0 : index
    %c0_1 = arith.constant 0 : index
    %3 = vector.load %arg9[%c0, %c0_1] : memref<256x128xf32, #tpu.memory_space<vmem>>, vector<256x128xf32>
    %c0_2 = arith.constant 0 : index
    %c0_3 = arith.constant 0 : index
    %4 = vector.load %arg2[%c0_2, %c0_3] : memref<256x512xbf16, #tpu.memory_space<vmem>>, vector<256x512xbf16>
    %c0_4 = arith.constant 0 : index
    %c0_5 = arith.constant 0 : index
    %5 = vector.load %arg3[%c0_4, %c0_5] : memref<512x128xbf16, #tpu.memory_space<vmem>>, vector<512x128xbf16>
    %cst = arith.constant dense<0.000000e+00> : vector<256x128xf32>
    %6 = tpu.matmul %4, %5, %cst {dimension_numbers = #tpu.dot_dimension_numbers<[1], [0], [0], [1], [0, 0, 1, 1], [], []>} : vector<256x512xbf16>, vector<512x128xbf16>, vector<256x128xf32> -> vector<256x128xf32>
    %7 = arith.addf %3, %6 : vector<256x128xf32>
    %c0_6 = arith.constant 0 : index
    %c0_7 = arith.constant 0 : index
    %8 = vector.load %arg9[%c0_6, %c0_7] : memref<256x128xf32, #tpu.memory_space<vmem>>, vector<256x128xf32>
    tpu.vector_store %arg9[%c0_6, %c0_7], %7 {strides = array<i32>} : memref<256x128xf32, #tpu.memory_space<vmem>>, vector<256x128xf32>,
    %c0_i32_8 = arith.constant 0 : i32
    %9 = arith.cmpi eq, %arg1, %c0_i32_8 : i32
    %10 = arith.extui %9 : i1 to i32
    %c0_i32_9 = arith.constant 0 : i32
    %11 = arith.cmpi ne, %10, %c0_i32_9 : i32
    scf.if %11 {
      %c0_10 = arith.constant 0 : index
      %c0_11 = arith.constant 0 : index
      %12 = vector.load %arg9[%c0_10, %c0_11] : memref<256x128xf32, #tpu.memory_space<vmem>>, vector<256x128xf32>
      %c0_12 = arith.constant 0 : index
      %c0_13 = arith.constant 0 : index
      %13 = vector.load %arg5[%c0_12, %c0_13] : memref<256x1xf32, #tpu.memory_space<vmem>>, vector<256x1xf32>
      %14 = vector.broadcast %13 : vector<256x1xf32> to vector<256x128xf32>
      %15 = arith.mulf %12, %14 : vector<256x128xf32>
      %c0_14 = arith.constant 0 : index
      %c0_15 = arith.constant 0 : index
      %16 = vector.load %arg4[%c0_14, %c0_15] : memref<256x128xf32, #tpu.memory_space<vmem>>, vector<256x128xf32>
      %c0_16 = arith.constant 0 : index
      %c0_17 = arith.constant 0 : index
      %17 = vector.load %arg6[%c0_16, %c0_17] : memref<128x128xf32, #tpu.memory_space<vmem>>, vector<128x128xf32>
      %cst_18 = arith.constant dense<0.000000e+00> : vector<256x128xf32>
      %18 = tpu.matmul %16, %17, %cst_18 {dimension_numbers = #tpu.dot_dimension_numbers<[1], [0], [0], [1], [0, 0, 1, 1], [], []>} : vector<256x128xf32>, vector<128x128xf32>, vector<256x128xf32> -> vector<256x128xf32>
      %c0_19 = arith.constant 0 : index
      %c0_20 = arith.constant 0 : index
      %19 = vector.load %arg7[%c0_19, %c0_20] : memref<128x128xf32, #tpu.memory_space<vmem>>, vector<128x128xf32>
      %cst_21 = arith.constant dense<0.000000e+00> : vector<256x128xf32>
      %20 = tpu.matmul %15, %19, %cst_21 {dimension_numbers = #tpu.dot_dimension_numbers<[1], [0], [0], [1], [0, 0, 1, 1], [], []>} : vector<256x128xf32>, vector<128x128xf32>, vector<256x128xf32> -> vector<256x128xf32>
      %21 = arith.addf %18, %20 : vector<256x128xf32>
      %cst_22 = arith.constant 0.000000e+00 : f32
      %22 = vector.broadcast %cst_22 : f32 to vector<256x128xf32>
      %23 = arith.maximumf %21, %22 : vector<256x128xf32>
      %c0_23 = arith.constant 0 : index
      %c0_24 = arith.constant 0 : index
      %24 = vector.load %arg8[%c0_23, %c0_24] : memref<256x128xf32, #tpu.memory_space<vmem>>, vector<256x128xf32>
      tpu.vector_store %arg8[%c0_23, %c0_24], %23 {strides = array<i32>} : memref<256x128xf32, #tpu.memory_space<vmem>>, vector<256x128xf32>,
    } else {
    }
    return
  }
  func.func @transform_0(%arg0: i32, %arg1: i32) -> (i32, i32) {
    %c0_i32 = arith.constant 0 : i32
    return %arg0, %arg1 : i32, i32
  }
  func.func @transform_1(%arg0: i32, %arg1: i32) -> (i32, i32) {
    %c0_i32 = arith.constant 0 : i32
    %c0_i32_0 = arith.constant 0 : i32
    return %arg1, %c0_i32 : i32, i32
  }
  func.func @transform_2(%arg0: i32, %arg1: i32) -> (i32, i32) {
    %c0_i32 = arith.constant 0 : i32
    %c0_i32_0 = arith.constant 0 : i32
    return %arg0, %c0_i32 : i32, i32
  }
  func.func @transform_3(%arg0: i32, %arg1: i32) -> (i32, i32) {
    %c0_i32 = arith.constant 0 : i32
    %c0_i32_0 = arith.constant 0 : i32
    return %arg0, %c0_i32 : i32, i32
  }
  func.func @transform_4(%arg0: i32, %arg1: i32) -> (i32, i32) {
    %c0_i32 = arith.constant 0 : i32
    %c0_i32_0 = arith.constant 0 : i32
    %c0_i32_1 = arith.constant 0 : i32
    return %c0_i32, %c0_i32_0 : i32, i32
  }
  func.func @transform_5(%arg0: i32, %arg1: i32) -> (i32, i32) {
    %c0_i32 = arith.constant 0 : i32
    %c0_i32_0 = arith.constant 0 : i32
    %c0_i32_1 = arith.constant 0 : i32
    return %c0_i32, %c0_i32_0 : i32, i32
  }
  func.func @transform_6(%arg0: i32, %arg1: i32) -> (i32, i32) {
    %c0_i32 = arith.constant 0 : i32
    %c0_i32_0 = arith.constant 0 : i32
    return %arg0, %c0_i32 : i32, i32
  }
}

</mosaic_0001>

<llo_original>
// kernel: tpu_custom_call.1
$region0: #{tpu_custom_call.1}
  #allocation0 [shape = 'u32[]', space=smem, size = 0x4, offset = 0x4, fixed_abs, tag = 'smem constant byte address 0x4 - core index']
  #allocation1 [shape = 'u32[144,128]{1,0:T(1,128)}', space=vmem, size = 0x12000, scoped, tag = 'internal scratch']
  #allocation2 [shape = 'f32[256,128]{1,0:T(8,128)}', space=vmem, size = 0x20000, scoped, tag = 'scratch operand']
  %s0 = inlined_call_operand.hbm [shape: bf16[512,512], index: 0, kind: input, shape index: {}]
  %s1 = inlined_call_operand.hbm [shape: bf16[512,128], index: 1, kind: input, shape index: {}]
  %s2 = inlined_call_operand.vmem [shape: f32[512,128], index: 2, kind: input, shape index: {}]
  %s3 = inlined_call_operand.vmem [shape: f32[512,1], index: 3, kind: input, shape index: {}]
  %s4 = inlined_call_operand.hbm [shape: f32[128,128], index: 4, kind: input, shape index: {}]
  %s5 = inlined_call_operand.hbm [shape: f32[128,128], index: 5, kind: input, shape index: {}]
  %s6 = inlined_call_operand.hbm [shape: f32[512,128], index: 6, kind: output, shape index: {}]
  %s7 = sld [smem:[#allocation0]]
  $region81: #{tpu_custom_call.1} parent=0
    _
  %s9 = ssub.s32 1, %s7
  %s10 = scalar_select 0, %s9, %s7
  $region1: #{tpu_custom_call.1} parent=0
    #allocation3 [shape = 'u8[524288]{0}', space=vmem, size = 0x80000, scoped, tag = 'input window, operand 0']
    #allocation4 [shape = 's32[2]{0}', space=sflag, size = 0x8, scoped, tag = 'scoped memory for tpu_custom_call.1']
    #allocation5 [shape = 's32[2]{0}', space=sflag, size = 0x8, scoped, tag = 'scoped memory for tpu_custom_call.1']
    #allocation6 [shape = 'u8[131072]{0}', space=vmem, size = 0x20000, scoped, tag = 'input window, operand 1, single buffered']
    #allocation7 [shape = 's32[1]{0}', space=sflag, size = 0x4, scoped, tag = 'scoped memory for tpu_custom_call.1']
    #allocation8 [shape = 'u8[65536]{0}', space=vmem, size = 0x10000, scoped, tag = 'input window, operand 4, single buffered']
    #allocation9 [shape = 'u8[65536]{0}', space=vmem, size = 0x10000, scoped, tag = 'input window, operand 5, single buffered']
    #allocation10 [shape = 's32[1]{0}', space=sflag, size = 0x4, scoped, tag = 'scoped memory for tpu_custom_call.1']
    #allocation11 [shape = 'u8[262144]{0}', space=vmem, size = 0x40000, scoped, tag = 'output window, operand 0']
    %11 = vsyncpa [#allocation4], 0
    %s12 = scalar_lea.sflag [#allocation4], 1
    %13 = vsyncpa %s12, 0
    %14 = vsyncpa [#allocation7], 0
    %15 = vsyncpa [#allocation10], 0
    %16 = vsyncpa [#allocation5], 0
    %s17 = scalar_lea.sflag [#allocation5], 1
    %18 = vsyncpa %s17, 0
    loop: start=0, step=1, limit=4
    $region2: #{tpu_custom_call.1} parent=1 // loop_pre_header
      _
    $region3: #{tpu_custom_call.1} parent=1 // loop_header
      %s20 = sphi 0, %s24
      %p21 = scmp.ge.s32.totalorder %s20, 4
      %s27 = sphi 0, %s39
      %s28 = sphi 0, %s35
      %s29 = sphi 0, %s27
      %s30 = sphi 0, %s28
      %s31 = sphi 0, %s29
      %s32 = sphi 0, %s30
      %s44 = sphi 0, %s46
      %s47 = sphi 0, %s44
      %s48 = sphi 0, %s47
      %s64 = sphi 0, %s48
      %s70 = sphi 0, %s72
      %s73 = sphi 0, %s70
      %s74 = sphi 0, %s73
      %s90 = sphi 0, %s74
      %s96 = sphi 0, %s98
      %s99 = sphi 0, %s96
      %s100 = sphi 0, %s99
      %s116 = sphi 0, %s100
      %s122 = sphi 0, %s124
      %s125 = sphi 0, %s122
      %s126 = sphi 0, %s125
      %s142 = sphi 0, %s126
      %s146 = sphi 0, %s146
      %s148 = sphi 0, %s146
      %s149 = sphi 0, %s148
      %s163 = sphi 0, %s149
      %s167 = sphi 0, %s167
      %s169 = sphi 0, %s167
      %s170 = sphi 0, %s169
      %s184 = sphi 0, %s170
      %s190 = sphi 0, %s192
      %s193 = sphi 0, %s190
      %s194 = sphi 0, %s193
      %s210 = sphi 0, %s194
    $region4: #{tpu_custom_call.1} parent=1 // loop_header_branch
      %23 = sbr.rel (%p21) target = $region8
    $region5: #{tpu_custom_call.1} parent=1 // loop_body
      %s25 = ssub.s32 %s20, 1
      %s26 = ssub.s32 %s20, 2
      %s33 = sadd.s32 1, %s28
      %p34 = scmp.ge.s32.totalorder %s33, 1
      %s35 = scalar_select %p34, 0, %s33
      %s36 = sadd.s32 1, %s27
      %s37 = scalar_select %p34, %s36, %s27
      %p38 = scmp.ge.s32.totalorder %s37, 2
      %s39 = scalar_select %p38, 0, %s37
      %s40 = ssub.s32 %s27, %s39
      %s41 = ssub.s32 %s28, %s35
      %s42 = sor.u32 %s40, %s41
      %p43 = scmp.eq.s32.totalorder %s42, 0
      %s45 = sadd.s32 %s44, 1
      %s46 = scalar_select %p43, %s44, %s45
      %p49 = pneg %p43
      %p50 = scmp.eq.s32.totalorder %s20, 1
      %p51 = por %p49, %p50
      %p52 = scmp.ne.s32.totalorder %s44, %s47
      %p53 = scmp.eq.s32.totalorder %s20, 0
      %p54 = por %p52, %p53
      %p55 = scmp.ne.s32.totalorder %s44, %s47
      %p56 = scmp.eq.s32.totalorder %s25, 1
      %p57 = por %p55, %p56
      %p58 = scmp.ne.s32.totalorder %s47, %s48
      %p59 = scmp.eq.s32.totalorder %s25, 0
      %p60 = por %p58, %p59
      %p61 = scmp.ne.s32.totalorder %s47, %s48
      %p62 = scmp.eq.s32.totalorder %s26, 1
      %p63 = por %p61, %p62
      %p65 = scmp.ne.s32.totalorder %s48, %s64
      %p66 = scmp.eq.s32.totalorder %s26, 0
      %p67 = por %p65, %p66
      %s68 = ssub.s32 %s28, %s35
      %p69 = scmp.eq.s32.totalorder %s68, 0
      %s71 = sadd.s32 %s70, 1
      %s72 = scalar_select %p69, %s70, %s71
      %p75 = pneg %p69
      %p76 = scmp.eq.s32.totalorder %s20, 1
      %p77 = por %p75, %p76
      %p78 = scmp.ne.s32.totalorder %s70, %s73
      %p79 = scmp.eq.s32.totalorder %s20, 0
      %p80 = por %p78, %p79
      %p81 = scmp.ne.s32.totalorder %s70, %s73
      %p82 = scmp.eq.s32.totalorder %s25, 1
      %p83 = por %p81, %p82
      %p84 = scmp.ne.s32.totalorder %s73, %s74
      %p85 = scmp.eq.s32.totalorder %s25, 0
      %p86 = por %p84, %p85
      %p87 = scmp.ne.s32.totalorder %s73, %s74
      %p88 = scmp.eq.s32.totalorder %s26, 1
      %p89 = por %p87, %p88
      %p91 = scmp.ne.s32.totalorder %s74, %s90
      %p92 = scmp.eq.s32.totalorder %s26, 0
      %p93 = por %p91, %p92
      %s94 = ssub.s32 %s27, %s39
      %p95 = scmp.eq.s32.totalorder %s94, 0
      %s97 = sadd.s32 %s96, 1
      %s98 = scalar_select %p95, %s96, %s97
      %p101 = pneg %p95
      %p102 = scmp.eq.s32.totalorder %s20, 1
      %p103 = por %p101, %p102
      %p104 = scmp.ne.s32.totalorder %s96, %s99
      %p105 = scmp.eq.s32.totalorder %s20, 0
      %p106 = por %p104, %p105
      %p107 = scmp.ne.s32.totalorder %s96, %s99
      %p108 = scmp.eq.s32.totalorder %s25, 1
      %p109 = por %p107, %p108
      %p110 = scmp.ne.s32.totalorder %s99, %s100
      %p111 = scmp.eq.s32.totalorder %s25, 0
      %p112 = por %p110, %p111
      %p113 = scmp.ne.s32.totalorder %s99, %s100
      %p114 = scmp.eq.s32.totalorder %s26, 1
      %p115 = por %p113, %p114
      %p117 = scmp.ne.s32.totalorder %s100, %s116
      %p118 = scmp.eq.s32.totalorder %s26, 0
      %p119 = por %p117, %p118
      %s120 = ssub.s32 %s27, %s39
      %p121 = scmp.eq.s32.totalorder %s120, 0
      %s123 = sadd.s32 %s122, 1
      %s124 = scalar_select %p121, %s122, %s123
      %p127 = pneg %p121
      %p128 = scmp.eq.s32.totalorder %s20, 1
      %p129 = por %p127, %p128
      %p130 = scmp.ne.s32.totalorder %s122, %s125
      %p131 = scmp.eq.s32.totalorder %s20, 0
      %p132 = por %p130, %p131
      %p133 = scmp.ne.s32.totalorder %s122, %s125
      %p134 = scmp.eq.s32.totalorder %s25, 1
      %p135 = por %p133, %p134
      %p136 = scmp.ne.s32.totalorder %s125, %s126
      %p137 = scmp.eq.s32.totalorder %s25, 0
      %p138 = por %p136, %p137
      %p139 = scmp.ne.s32.totalorder %s125, %s126
      %p140 = scmp.eq.s32.totalorder %s26, 1
      %p141 = por %p139, %p140
      %p143 = scmp.ne.s32.totalorder %s126, %s142
      %p144 = scmp.eq.s32.totalorder %s26, 0
      %p145 = por %p143, %p144
      %s147 = sadd.s32 %s146, 1
      %p150 = scmp.eq.s32.totalorder %s20, 1
      %p151 = scmp.ne.s32.totalorder %s146, %s148
      %p152 = scmp.eq.s32.totalorder %s20, 0
      %p153 = por %p151, %p152
      %p154 = scmp.ne.s32.totalorder %s146, %s148
      %p155 = scmp.eq.s32.totalorder %s25, 1
      %p156 = por %p154, %p155
      %p157 = scmp.ne.s32.totalorder %s148, %s149
      %p158 = scmp.eq.s32.totalorder %s25, 0
      %p159 = por %p157, %p158
      %p160 = scmp.ne.s32.totalorder %s148, %s149
      %p161 = scmp.eq.s32.totalorder %s26, 1
      %p162 = por %p160, %p161
      %p164 = scmp.ne.s32.totalorder %s149, %s163
      %p165 = scmp.eq.s32.totalorder %s26, 0
      %p166 = por %p164, %p165
      %s168 = sadd.s32 %s167, 1
      %p171 = scmp.eq.s32.totalorder %s20, 1
      %p172 = scmp.ne.s32.totalorder %s167, %s169
      %p173 = scmp.eq.s32.totalorder %s20, 0
      %p174 = por %p172, %p173
      %p175 = scmp.ne.s32.totalorder %s167, %s169
      %p176 = scmp.eq.s32.totalorder %s25, 1
      %p177 = por %p175, %p176
      %p178 = scmp.ne.s32.totalorder %s169, %s170
      %p179 = scmp.eq.s32.totalorder %s25, 0
      %p180 = por %p178, %p179
      %p181 = scmp.ne.s32.totalorder %s169, %s170
      %p182 = scmp.eq.s32.totalorder %s26, 1
      %p183 = por %p181, %p182
      %p185 = scmp.ne.s32.totalorder %s170, %s184
      %p186 = scmp.eq.s32.totalorder %s26, 0
      %p187 = por %p185, %p186
      %s188 = ssub.s32 %s27, %s39
      %p189 = scmp.eq.s32.totalorder %s188, 0
      %s191 = sadd.s32 %s190, 1
      %s192 = scalar_select %p189, %s190, %s191
      %p195 = pneg %p189
      %p196 = scmp.eq.s32.totalorder %s20, 1
      %p197 = por %p195, %p196
      %p198 = scmp.ne.s32.totalorder %s190, %s193
      %p199 = scmp.eq.s32.totalorder %s20, 0
      %p200 = por %p198, %p199
      %p201 = scmp.ne.s32.totalorder %s190, %s193
      %p202 = scmp.eq.s32.totalorder %s25, 1
      %p203 = por %p201, %p202
      %p204 = scmp.ne.s32.totalorder %s193, %s194
      %p205 = scmp.eq.s32.totalorder %s25, 0
      %p206 = por %p204, %p205
      %p207 = scmp.ne.s32.totalorder %s193, %s194
      %p208 = scmp.eq.s32.totalorder %s26, 1
      %p209 = por %p207, %p208
      %p211 = scmp.ne.s32.totalorder %s194, %s210
      %p212 = scmp.eq.s32.totalorder %s26, 0
      %p213 = por %p211, %p212
      %p214 = scmp.le.s32.totalorder 1, %s20
      %p215 = scmp.lt.s32.totalorder %s20, 3
      %p216 = pnand %p214, %p215
      %p217 = pneg %p216
      // Predicated region
      $region9: #{tpu_custom_call.1} parent=5 // pred_check
        _
      $region10: #{tpu_custom_call.1} parent=5 // pred_check_branch
        %219 = sbr.rel (%p216) target = $region12
      $region11: #{tpu_custom_call.1} parent=5 // pred_region
        %s220 = ssub.s32 %s20, 1
        // Predicated region
        $region13: #{tpu_custom_call.1} parent=11 // pred_check
          %p221 = pneg %p86
        $region14: #{tpu_custom_call.1} parent=11 // pred_check_branch
          %223 = sbr.rel (%p221) target = $region16
        $region15: #{tpu_custom_call.1} parent=11 // pred_region
          %s224 = smul.u32 64, %s30
          %s226 = ssub.s32 4096, 4096
          %227 = vsyncadd [#allocation7], %s226
          %s228 = smul.addr %s224, 64
          %s229 = scalar_lea.hbm %s1, %s228
          %s230 = sshll.u32 [#allocation6], 4
          %s231 = int_to_ptr.vmem [resolvable:$true] %s230
          %236 = dma.hbm_to_vmem [thread:$0]  %s229, 4096, %s231, [#allocation7], 64, 64, 4
        $region16: #{tpu_custom_call.1} parent=11 // pred_fallthru
          _
        // Predicated region
        $region17: #{tpu_custom_call.1} parent=11 // pred_check
          %p237 = pneg %p159
        $region18: #{tpu_custom_call.1} parent=11 // pred_check_branch
          %239 = sbr.rel (%p237) target = $region20
        $region19: #{tpu_custom_call.1} parent=11 // pred_region
          %s241 = ssub.s32 2048, 2048
          %242 = vsyncadd [#allocation7], %s241
          %s243 = sshll.u32 [#allocation8], 4
          %s244 = int_to_ptr.vmem [resolvable:$true] %s243
          %249 = dma.hbm_to_vmem [thread:$0]  %s4, 2048, %s244, [#allocation7], 128, 128, 8
        $region20: #{tpu_custom_call.1} parent=11 // pred_fallthru
          _
        // Predicated region
        $region21: #{tpu_custom_call.1} parent=11 // pred_check
          %p250 = pneg %p180
        $region22: #{tpu_custom_call.1} parent=11 // pred_check_branch
          %252 = sbr.rel (%p250) target = $region24
        $region23: #{tpu_custom_call.1} parent=11 // pred_region
          %s254 = ssub.s32 2048, 2048
          %255 = vsyncadd [#allocation10], %s254
          %s256 = sshll.u32 [#allocation9], 4
          %s257 = int_to_ptr.vmem [resolvable:$true] %s256
          %262 = dma.hbm_to_vmem [thread:$0]  %s5, 2048, %s257, [#allocation10], 128, 128, 8
        $region24: #{tpu_custom_call.1} parent=11 // pred_fallthru
          _
      $region12: #{tpu_custom_call.1} parent=5 // pred_fallthru
        _
      %p263 = scmp.lt.s32.totalorder %s20, 2
      // Predicated region
      $region25: #{tpu_custom_call.1} parent=5 // pred_check
        %p264 = pneg %p263
      $region26: #{tpu_custom_call.1} parent=5 // pred_check_branch
        %266 = sbr.rel (%p264) target = $region28
      $region27: #{tpu_custom_call.1} parent=5 // pred_region
        // Predicated region
        $region29: #{tpu_custom_call.1} parent=27 // pred_check
          %p267 = pneg %p54
        $region30: #{tpu_custom_call.1} parent=27 // pred_check_branch
          %269 = sbr.rel (%p267) target = $region32
        $region31: #{tpu_custom_call.1} parent=27 // pred_region
          %s270 = sand.u32 %s44, 1
          %s271 = scalar_lea.sflag [#allocation4], %s270
          %s272 = sand.u32 %s44, 1
          %s273 = smul.addr %s272, 512
          %s274 = scalar_lea.vmem [#allocation3], %s273
          %s275 = smul.u32 32, %s27
          %s276 = smul.u32 4, %s28
          %s278 = ssub.s32 8192, 8192
          %279 = vsyncadd %s271, %s278
          %s280 = smul.addr %s275, 4
          %s281 = sadd.s32 %s276, %s280
          %s282 = smul.addr %s281, 64
          %s283 = scalar_lea.hbm %s0, %s282
          %s284 = sshll.u32 %s274, 4
          %s285 = int_to_ptr.vmem [resolvable:$true] %s284
          %290 = dma.hbm_to_vmem [thread:$0]  %s283, 8192, %s285, %s271, 256, 256, 16
        $region32: #{tpu_custom_call.1} parent=27 // pred_fallthru
          _
        // Predicated region
        $region33: #{tpu_custom_call.1} parent=27 // pred_check
          %p291 = pneg %p106
        $region34: #{tpu_custom_call.1} parent=27 // pred_check_branch
          %293 = sbr.rel (%p291) target = $region36
        $region35: #{tpu_custom_call.1} parent=27 // pred_region
          %s294 = smul.u32 32, %s27
          %p295 = scmp.lt.s32.totalorder %s294, 63
          %s296 = scalar_select %p295, %s294, 63
          %s297 = smul.addr %s296, 8
          %s298 = scalar_lea.vmem %s2, %s297
          %s299 = smul.u32 32, %s27
        $region36: #{tpu_custom_call.1} parent=27 // pred_fallthru
          _
        // Predicated region
        $region37: #{tpu_custom_call.1} parent=27 // pred_check
          %p300 = pneg %p132
        $region38: #{tpu_custom_call.1} parent=27 // pred_check_branch
          %302 = sbr.rel (%p300) target = $region40
        $region39: #{tpu_custom_call.1} parent=27 // pred_region
          %s303 = smul.u32 32, %s27
          %p304 = scmp.lt.s32.totalorder %s303, 63
          %s305 = scalar_select %p304, %s303, 63
          %s306 = smul.addr %s305, 8
          %s307 = scalar_lea.vmem %s3, %s306
          %s308 = smul.u32 32, %s27
        $region40: #{tpu_custom_call.1} parent=27 // pred_fallthru
          _
      $region28: #{tpu_custom_call.1} parent=5 // pred_fallthru
        _
      %p309 = scmp.le.s32.totalorder 1, %s20
      %p310 = scmp.lt.s32.totalorder %s20, 3
      %p311 = pnand %p309, %p310
      %p312 = pneg %p311
      // Predicated region
      $region41: #{tpu_custom_call.1} parent=5 // pred_check
        _
      $region42: #{tpu_custom_call.1} parent=5 // pred_check_branch
        %314 = sbr.rel (%p311) target = $region44
      $region43: #{tpu_custom_call.1} parent=5 // pred_region
        %s315 = ssub.s32 %s20, 1
        %s316 = sand.u32 %s47, 1
        %s317 = scalar_lea.sflag [#allocation4], %s316
        %s318 = sand.u32 %s47, 1
        %s319 = smul.addr %s318, 512
        %s320 = scalar_lea.vmem [#allocation3], %s319
        // Predicated region
        $region45: #{tpu_custom_call.1} parent=43 // pred_check
          %p321 = pneg %p60
        $region46: #{tpu_custom_call.1} parent=43 // pred_check_branch
          %323 = sbr.rel (%p321) target = $region48
        $region47: #{tpu_custom_call.1} parent=43 // pred_region
          %324 = dma.done %s317, 8192
        $region48: #{tpu_custom_call.1} parent=43 // pred_fallthru
          _
        // Predicated region
        $region49: #{tpu_custom_call.1} parent=43 // pred_check
          %p325 = pneg %p86
        $region50: #{tpu_custom_call.1} parent=43 // pred_check_branch
          %327 = sbr.rel (%p325) target = $region52
        $region51: #{tpu_custom_call.1} parent=43 // pred_region
          %328 = dma.done [#allocation7], 4096
        $region52: #{tpu_custom_call.1} parent=43 // pred_fallthru
          _
        // Predicated region
        $region53: #{tpu_custom_call.1} parent=43 // pred_check
          %p329 = pneg %p159
        $region54: #{tpu_custom_call.1} parent=43 // pred_check_branch
          %331 = sbr.rel (%p329) target = $region56
        $region55: #{tpu_custom_call.1} parent=43 // pred_region
          %332 = dma.done [#allocation7], 2048
        $region56: #{tpu_custom_call.1} parent=43 // pred_fallthru
          _
        // Predicated region
        $region57: #{tpu_custom_call.1} parent=43 // pred_check
          %p333 = pneg %p180
        $region58: #{tpu_custom_call.1} parent=43 // pred_check_branch
          %335 = sbr.rel (%p333) target = $region60
        $region59: #{tpu_custom_call.1} parent=43 // pred_region
          %336 = dma.done [#allocation10], 2048
        $region60: #{tpu_custom_call.1} parent=43 // pred_fallthru
          _
        %s337 = sand.u32 %s47, 1
        %s338 = scalar_lea.sflag [#allocation4], %s337
        %s339 = sand.u32 %s47, 1
        %s340 = smul.addr %s339, 512
        %s341 = scalar_lea.vmem [#allocation3], %s340
        %p342 = pneg %p60
        %p343 = pneg %p57
        %p344 = pneg %p86
        %p345 = pneg %p83
        %s346 = smul.u32 32, %s29
        %p347 = scmp.lt.s32.totalorder %s346, 63
        %s348 = scalar_select %p347, %s346, 63
        %s349 = smul.addr %s348, 8
        %s350 = scalar_lea.vmem %s2, %s349
        %p351 = pneg %p112
        %p352 = pneg %p109
        %s353 = smul.u32 32, %s29
        %p354 = scmp.lt.s32.totalorder %s353, 63
        %s355 = scalar_select %p354, %s353, 63
        %s356 = smul.addr %s355, 8
        %s357 = scalar_lea.vmem %s3, %s356
        %p358 = pneg %p138
        %p359 = pneg %p135
        %p360 = pneg %p159
        %p361 = pneg %p156
        %p362 = pneg %p180
        %p363 = pneg %p177
        %p364 = pneg %p206
        %p365 = pneg %p203
        %s366 = sand.u32 %s193, 1
        %s367 = scalar_lea.sflag [#allocation5], %s366
        %s368 = sand.u32 %s193, 1
        %s369 = smul.addr %s368, 256
        %s370 = scalar_lea.vmem [#allocation11], %s369
        %s371 = smul.u32 32, %s29
        %s372 = smul.u32 4, %s30
        %s373 = smul.u32 64, %s30
        %s374 = smul.u32 32, %s29
        %p375 = scmp.lt.s32.totalorder %s374, 63
        %s376 = scalar_select %p375, %s374, 63
        %s377 = smul.addr %s376, 8
        %s378 = scalar_lea.vmem %s2, %s377
        %s379 = smul.u32 32, %s29
        %s380 = smul.u32 32, %s29
        %p381 = scmp.lt.s32.totalorder %s380, 63
        %s382 = scalar_select %p381, %s380, 63
        %s383 = smul.addr %s382, 8
        %s384 = scalar_lea.vmem %s3, %s383
        %s385 = smul.u32 32, %s29
        %s386 = smul.u32 32, %s29
        %p388 = scmp.eq.s32.totalorder %s30, 0
        // Predicated region
        $region61: #{tpu_custom_call.1} parent=43 // pred_check
          %p389 = pneg %p388
        $region62: #{tpu_custom_call.1} parent=43 // pred_check_branch
          %391 = sbr.rel (%p389) target = $region64
        $region63: #{tpu_custom_call.1} parent=43 // pred_region
          %392 = vst [vmem:[#allocation2] sm:$0xff] 0.0
          %393 = vst [vmem:[#allocation2 + $0x8] sm:$0xff] 0.0
          %394 = vst [vmem:[#allocation2 + $0x10] sm:$0xff] 0.0
          %395 = vst [vmem:[#allocation2 + $0x18] sm:$0xff] 0.0
          %396 = vst [vmem:[#allocation2 + $0x20] sm:$0xff] 0.0
          %397 = vst [vmem:[#allocation2 + $0x28] sm:$0xff] 0.0
          %398 = vst [vmem:[#allocation2 + $0x30] sm:$0xff] 0.0
          %399 = vst [vmem:[#allocation2 + $0x38] sm:$0xff] 0.0
          %400 = vst [vmem:[#allocation2 + $0x40] sm:$0xff] 0.0
          %401 = vst [vmem:[#allocation2 + $0x48] sm:$0xff] 0.0
          %402 = vst [vmem:[#allocation2 + $0x50] sm:$0xff] 0.0
          %403 = vst [vmem:[#allocation2 + $0x58] sm:$0xff] 0.0
          %404 = vst [vmem:[#allocation2 + $0x60] sm:$0xff] 0.0
          %405 = vst [vmem:[#allocation2 + $0x68] sm:$0xff] 0.0
          %406 = vst [vmem:[#allocation2 + $0x70] sm:$0xff] 0.0
          %407 = vst [vmem:[#allocation2 + $0x78] sm:$0xff] 0.0
          %408 = vst [vmem:[#allocation2 + $0x80] sm:$0xff] 0.0
          %409 = vst [vmem:[#allocation2 + $0x88] sm:$0xff] 0.0
          %410 = vst [vmem:[#allocation2 + $0x90] sm:$0xff] 0.0
          %411 = vst [vmem:[#allocation2 + $0x98] sm:$0xff] 0.0
          %412 = vst [vmem:[#allocation2 + $0xa0] sm:$0xff] 0.0
          %413 = vst [vmem:[#allocation2 + $0xa8] sm:$0xff] 0.0
          %414 = vst [vmem:[#allocation2 + $0xb0] sm:$0xff] 0.0
          %415 = vst [vmem:[#allocation2 + $0xb8] sm:$0xff] 0.0
          %416 = vst [vmem:[#allocation2 + $0xc0] sm:$0xff] 0.0
          %417 = vst [vmem:[#allocation2 + $0xc8] sm:$0xff] 0.0
          %418 = vst [vmem:[#allocation2 + $0xd0] sm:$0xff] 0.0
          %419 = vst [vmem:[#allocation2 + $0xd8] sm:$0xff] 0.0
          %420 = vst [vmem:[#allocation2 + $0xe0] sm:$0xff] 0.0
          %421 = vst [vmem:[#allocation2 + $0xe8] sm:$0xff] 0.0
          %422 = vst [vmem:[#allocation2 + $0xf0] sm:$0xff] 0.0
          %423 = vst [vmem:[#allocation2 + $0xf8] sm:$0xff] 0.0
        $region64: #{tpu_custom_call.1} parent=43 // pred_fallthru
          _
        %v424 = vld [vmem:[#allocation2] sm:$0xff]
        %v425 = vld [vmem:[#allocation2 + $0x8] sm:$0xff]
        %v426 = vld [vmem:[#allocation2 + $0x10] sm:$0xff]
        %v427 = vld [vmem:[#allocation2 + $0x18] sm:$0xff]
        %v428 = vld [vmem:[#allocation2 + $0x20] sm:$0xff]
        %v429 = vld [vmem:[#allocation2 + $0x28] sm:$0xff]
        %v430 = vld [vmem:[#allocation2 + $0x30] sm:$0xff]
        %v431 = vld [vmem:[#allocation2 + $0x38] sm:$0xff]
        %v432 = vld [vmem:[#allocation2 + $0x40] sm:$0xff]
        %v433 = vld [vmem:[#allocation2 + $0x48] sm:$0xff]
        %v434 = vld [vmem:[#allocation2 + $0x50] sm:$0xff]
        %v435 = vld [vmem:[#allocation2 + $0x58] sm:$0xff]
        %v436 = vld [vmem:[#allocation2 + $0x60] sm:$0xff]
        %v437 = vld [vmem:[#allocation2 + $0x68] sm:$0xff]
        %v438 = vld [vmem:[#allocation2 + $0x70] sm:$0xff]
        %v439 = vld [vmem:[#allocation2 + $0x78] sm:$0xff]
        %v440 = vld [vmem:[#allocation2 + $0x80] sm:$0xff]
        %v441 = vld [vmem:[#allocation2 + $0x88] sm:$0xff]
        %v442 = vld [vmem:[#allocation2 + $0x90] sm:$0xff]
        %v443 = vld [vmem:[#allocation2 + $0x98] sm:$0xff]
        %v444 = vld [vmem:[#allocation2 + $0xa0] sm:$0xff]
        %v445 = vld [vmem:[#allocation2 + $0xa8] sm:$0xff]
        %v446 = vld [vmem:[#allocation2 + $0xb0] sm:$0xff]
        %v447 = vld [vmem:[#allocation2 + $0xb8] sm:$0xff]
        %v448 = vld [vmem:[#allocation2 + $0xc0] sm:$0xff]
        %v449 = vld [vmem:[#allocation2 + $0xc8] sm:$0xff]
        %v450 = vld [vmem:[#allocation2 + $0xd0] sm:$0xff]
        %v451 = vld [vmem:[#allocation2 + $0xd8] sm:$0xff]
        %v452 = vld [vmem:[#allocation2 + $0xe0] sm:$0xff]
        %v453 = vld [vmem:[#allocation2 + $0xe8] sm:$0xff]
        %v454 = vld [vmem:[#allocation2 + $0xf0] sm:$0xff]
        %v455 = vld [vmem:[#allocation2 + $0xf8] sm:$0xff]
        %v456 = vld [vmem:[%s320] sm:$0xff]
        %v457 = vld [vmem:[%s320 + $0x8] sm:$0xff]
        %v458 = vld [vmem:[%s320 + $0x10] sm:$0xff]
        %v459 = vld [vmem:[%s320 + $0x18] sm:$0xff]
        %v460 = vld [vmem:[%s320 + $0x20] sm:$0xff]
        %v461 = vld [vmem:[%s320 + $0x28] sm:$0xff]
        %v462 = vld [vmem:[%s320 + $0x30] sm:$0xff]
        %v463 = vld [vmem:[%s320 + $0x38] sm:$0xff]
        %v464 = vld [vmem:[%s320 + $0x40] sm:$0xff]
        %v465 = vld [vmem:[%s320 + $0x48] sm:$0xff]
        %v466 = vld [vmem:[%s320 + $0x50] sm:$0xff]
        %v467 = vld [vmem:[%s320 + $0x58] sm:$0xff]
        %v468 = vld [vmem:[%s320 + $0x60] sm:$0xff]
        %v469 = vld [vmem:[%s320 + $0x68] sm:$0xff]
        %v470 = vld [vmem:[%s320 + $0x70] sm:$0xff]
        %v471 = vld [vmem:[%s320 + $0x78] sm:$0xff]
        %v472 = vld [vmem:[%s320 + $0x80] sm:$0xff]
        %v473 = vld [vmem:[%s320 + $0x88] sm:$0xff]
        %v474 = vld [vmem:[%s320 + $0x90] sm:$0xff]
        %v475 = vld [vmem:[%s320 + $0x98] sm:$0xff]
        %v476 = vld [vmem:[%s320 + $0xa0] sm:$0xff]
        %v477 = vld [vmem:[%s320 + $0xa8] sm:$0xff]
        %v478 = vld [vmem:[%s320 + $0xb0] sm:$0xff]
        %v479 = vld [vmem:[%s320 + $0xb8] sm:$0xff]
        %v480 = vld [vmem:[%s320 + $0xc0] sm:$0xff]
        %v481 = vld [vmem:[%s320 + $0xc8] sm:$0xff]
        %v482 = vld [vmem:[%s320 + $0xd0] sm:$0xff]
        %v483 = vld [vmem:[%s320 + $0xd8] sm:$0xff]
        %v484 = vld [vmem:[%s320 + $0xe0] sm:$0xff]
        %v485 = vld [vmem:[%s320 + $0xe8] sm:$0xff]
        %v486 = vld [vmem:[%s320 + $0xf0] sm:$0xff]
        %v487 = vld [vmem:[%s320 + $0xf8] sm:$0xff]
        %v488 = vld [vmem:[%s320 + $0x100] sm:$0xff]
        %v489 = vld [vmem:[%s320 + $0x108] sm:$0xff]
        %v490 = vld [vmem:[%s320 + $0x110] sm:$0xff]
        %v491 = vld [vmem:[%s320 + $0x118] sm:$0xff]
        %v492 = vld [vmem:[%s320 + $0x120] sm:$0xff]
        %v493 = vld [vmem:[%s320 + $0x128] sm:$0xff]
        %v494 = vld [vmem:[%s320 + $0x130] sm:$0xff]
        %v495 = vld [vmem:[%s320 + $0x138] sm:$0xff]
        %v496 = vld [vmem:[%s320 + $0x140] sm:$0xff]
        %v497 = vld [vmem:[%s320 + $0x148] sm:$0xff]
        %v498 = vld [vmem:[%s320 + $0x150] sm:$0xff]
        %v499 = vld [vmem:[%s320 + $0x158] sm:$0xff]
        %v500 = vld [vmem:[%s320 + $0x160] sm:$0xff]
        %v501 = vld [vmem:[%s320 + $0x168] sm:$0xff]
        %v502 = vld [vmem:[%s320 + $0x170] sm:$0xff]
        %v503 = vld [vmem:[%s320 + $0x178] sm:$0xff]
        %v504 = vld [vmem:[%s320 + $0x180] sm:$0xff]
        %v505 = vld [vmem:[%s320 + $0x188] sm:$0xff]
        %v506 = vld [vmem:[%s320 + $0x190] sm:$0xff]
        %v507 = vld [vmem:[%s320 + $0x198] sm:$0xff]
        %v508 = vld [vmem:[%s320 + $0x1a0] sm:$0xff]
        %v509 = vld [vmem:[%s320 + $0x1a8] sm:$0xff]
        %v510 = vld [vmem:[%s320 + $0x1b0] sm:$0xff]
        %v511 = vld [vmem:[%s320 + $0x1b8] sm:$0xff]
        %v512 = vld [vmem:[%s320 + $0x1c0] sm:$0xff]
        %v513 = vld [vmem:[%s320 + $0x1c8] sm:$0xff]
        %v514 = vld [vmem:[%s320 + $0x1d0] sm:$0xff]
        %v515 = vld [vmem:[%s320 + $0x1d8] sm:$0xff]
        %v516 = vld [vmem:[%s320 + $0x1e0] sm:$0xff]
        %v517 = vld [vmem:[%s320 + $0x1e8] sm:$0xff]
        %v518 = vld [vmem:[%s320 + $0x1f0] sm:$0xff]
        %v519 = vld [vmem:[%s320 + $0x1f8] sm:$0xff]
        %v520 = vld [vmem:[#allocation6] sm:$0xf]
        %v521 = vld [vmem:[#allocation6 + $0x4] sm:$0xf]
        %v522 = vld [vmem:[#allocation6 + $0x8] sm:$0xf]
        %v523 = vld [vmem:[#allocation6 + $0xc] sm:$0xf]
        %v524 = vld [vmem:[#allocation6 + $0x10] sm:$0xf]
        %v525 = vld [vmem:[#allocation6 + $0x14] sm:$0xf]
        %v526 = vld [vmem:[#allocation6 + $0x18] sm:$0xf]
        %v527 = vld [vmem:[#allocation6 + $0x1c] sm:$0xf]
        %v528 = vld [vmem:[#allocation6 + $0x20] sm:$0xf]
        %v529 = vld [vmem:[#allocation6 + $0x24] sm:$0xf]
        %v530 = vld [vmem:[#allocation6 + $0x28] sm:$0xf]
        %v531 = vld [vmem:[#allocation6 + $0x2c] sm:$0xf]
        %v532 = vld [vmem:[#allocation6 + $0x30] sm:$0xf]
        %v533 = vld [vmem:[#allocation6 + $0x34] sm:$0xf]
        %v534 = vld [vmem:[#allocation6 + $0x38] sm:$0xf]
        %v535 = vld [vmem:[#allocation6 + $0x3c] sm:$0xf]
        %v536 = vld [vmem:[#allocation6 + $0x40] sm:$0xf]
        %v537 = vld [vmem:[#allocation6 + $0x44] sm:$0xf]
        %v538 = vld [vmem:[#allocation6 + $0x48] sm:$0xf]
        %v539 = vld [vmem:[#allocation6 + $0x4c] sm:$0xf]
        %v540 = vld [vmem:[#allocation6 + $0x50] sm:$0xf]
        %v541 = vld [vmem:[#allocation6 + $0x54] sm:$0xf]
        %v542 = vld [vmem:[#allocation6 + $0x58] sm:$0xf]
        %v543 = vld [vmem:[#allocation6 + $0x5c] sm:$0xf]
        %v544 = vld [vmem:[#allocation6 + $0x60] sm:$0xf]
        %v545 = vld [vmem:[#allocation6 + $0x64] sm:$0xf]
        %v546 = vld [vmem:[#allocation6 + $0x68] sm:$0xf]
        %v547 = vld [vmem:[#allocation6 + $0x6c] sm:$0xf]
        %v548 = vld [vmem:[#allocation6 + $0x70] sm:$0xf]
        %v549 = vld [vmem:[#allocation6 + $0x74] sm:$0xf]
        %v550 = vld [vmem:[#allocation6 + $0x78] sm:$0xf]
        %v551 = vld [vmem:[#allocation6 + $0x7c] sm:$0xf]
        %v552 = vld [vmem:[#allocation6 + $0x80] sm:$0xf]
        %v553 = vld [vmem:[#allocation6 + $0x84] sm:$0xf]
        %v554 = vld [vmem:[#allocation6 + $0x88] sm:$0xf]
        %v555 = vld [vmem:[#allocation6 + $0x8c] sm:$0xf]
        %v556 = vld [vmem:[#allocation6 + $0x90] sm:$0xf]
        %v557 = vld [vmem:[#allocation6 + $0x94] sm:$0xf]
        %v558 = vld [vmem:[#allocation6 + $0x98] sm:$0xf]
        %v559 = vld [vmem:[#allocation6 + $0x9c] sm:$0xf]
        %v560 = vld [vmem:[#allocation6 + $0xa0] sm:$0xf]
        %v561 = vld [vmem:[#allocation6 + $0xa4] sm:$0xf]
        %v562 = vld [vmem:[#allocation6 + $0xa8] sm:$0xf]
        %v563 = vld [vmem:[#allocation6 + $0xac] sm:$0xf]
        %v564 = vld [vmem:[#allocation6 + $0xb0] sm:$0xf]
        %v565 = vld [vmem:[#allocation6 + $0xb4] sm:$0xf]
        %v566 = vld [vmem:[#allocation6 + $0xb8] sm:$0xf]
        %v567 = vld [vmem:[#allocation6 + $0xbc] sm:$0xf]
        %v568 = vld [vmem:[#allocation6 + $0xc0] sm:$0xf]
        %v569 = vld [vmem:[#allocation6 + $0xc4] sm:$0xf]
        %v570 = vld [vmem:[#allocation6 + $0xc8] sm:$0xf]
        %v571 = vld [vmem:[#allocation6 + $0xcc] sm:$0xf]
        %v572 = vld [vmem:[#allocation6 + $0xd0] sm:$0xf]
        %v573 = vld [vmem:[#allocation6 + $0xd4] sm:$0xf]
        %v574 = vld [vmem:[#allocation6 + $0xd8] sm:$0xf]
        %v575 = vld [vmem:[#allocation6 + $0xdc] sm:$0xf]
        %v576 = vld [vmem:[#allocation6 + $0xe0] sm:$0xf]
        %v577 = vld [vmem:[#allocation6 + $0xe4] sm:$0xf]
        %v578 = vld [vmem:[#allocation6 + $0xe8] sm:$0xf]
        %v579 = vld [vmem:[#allocation6 + $0xec] sm:$0xf]
        %v580 = vld [vmem:[#allocation6 + $0xf0] sm:$0xf]
        %v581 = vld [vmem:[#allocation6 + $0xf4] sm:$0xf]
        %v582 = vld [vmem:[#allocation6 + $0xf8] sm:$0xf]
        %v583 = vld [vmem:[#allocation6 + $0xfc] sm:$0xf]
        %v648 = vunpack.c.l.b16 %v456
        %v649 = vunpack.c.h.b16 %v456
        %v650 = vunpack.c.l.b16 %v457
        %v651 = vunpack.c.h.b16 %v457
        %v652 = vunpack.c.l.b16 %v458
        %v653 = vunpack.c.h.b16 %v458
        %v654 = vunpack.c.l.b16 %v459
        %v655 = vunpack.c.h.b16 %v459
        %v656 = vunpack.c.l.b16 %v460
        %v657 = vunpack.c.h.b16 %v460
        %v658 = vunpack.c.l.b16 %v461
        %v659 = vunpack.c.h.b16 %v461
        %v660 = vunpack.c.l.b16 %v462
        %v661 = vunpack.c.h.b16 %v462
        %v662 = vunpack.c.l.b16 %v463
        %v663 = vunpack.c.h.b16 %v463
        %v664 = vunpack.c.l.b16 %v464
        %v665 = vunpack.c.h.b16 %v464
        %v666 = vunpack.c.l.b16 %v465
        %v667 = vunpack.c.h.b16 %v465
        %v668 = vunpack.c.l.b16 %v466
        %v669 = vunpack.c.h.b16 %v466
        %v670 = vunpack.c.l.b16 %v467
        %v671 = vunpack.c.h.b16 %v467
        %v672 = vunpack.c.l.b16 %v468
        %v673 = vunpack.c.h.b16 %v468
        %v674 = vunpack.c.l.b16 %v469
        %v675 = vunpack.c.h.b16 %v469
        %v676 = vunpack.c.l.b16 %v470
        %v677 = vunpack.c.h.b16 %v470
        %v678 = vunpack.c.l.b16 %v471
        %v679 = vunpack.c.h.b16 %v471
        %v680 = vunpack.c.l.b16 %v472
        %v681 = vunpack.c.h.b16 %v472
        %v682 = vunpack.c.l.b16 %v473
        %v683 = vunpack.c.h.b16 %v473
        %v684 = vunpack.c.l.b16 %v474
        %v685 = vunpack.c.h.b16 %v474
        %v686 = vunpack.c.l.b16 %v475
        %v687 = vunpack.c.h.b16 %v475
        %v688 = vunpack.c.l.b16 %v476
        %v689 = vunpack.c.h.b16 %v476
        %v690 = vunpack.c.l.b16 %v477
        %v691 = vunpack.c.h.b16 %v477
        %v692 = vunpack.c.l.b16 %v478
        %v693 = vunpack.c.h.b16 %v478
        %v694 = vunpack.c.l.b16 %v479
        %v695 = vunpack.c.h.b16 %v479
        %v696 = vunpack.c.l.b16 %v480
        %v697 = vunpack.c.h.b16 %v480
        %v698 = vunpack.c.l.b16 %v481
        %v699 = vunpack.c.h.b16 %v481
        %v700 = vunpack.c.l.b16 %v482
        %v701 = vunpack.c.h.b16 %v482
        %v702 = vunpack.c.l.b16 %v483
        %v703 = vunpack.c.h.b16 %v483
        %v704 = vunpack.c.l.b16 %v484
        %v705 = vunpack.c.h.b16 %v484
        %v706 = vunpack.c.l.b16 %v485
        %v707 = vunpack.c.h.b16 %v485
        %v708 = vunpack.c.l.b16 %v486
        %v709 = vunpack.c.h.b16 %v486
        %v710 = vunpack.c.l.b16 %v487
        %v711 = vunpack.c.h.b16 %v487
        %v712 = vunpack.c.l.b16 %v488
        %v713 = vunpack.c.h.b16 %v488
        %v714 = vunpack.c.l.b16 %v489
        %v715 = vunpack.c.h.b16 %v489
        %v716 = vunpack.c.l.b16 %v490
        %v717 = vunpack.c.h.b16 %v490
        %v718 = vunpack.c.l.b16 %v491
        %v719 = vunpack.c.h.b16 %v491
        %v720 = vunpack.c.l.b16 %v492
        %v721 = vunpack.c.h.b16 %v492
        %v722 = vunpack.c.l.b16 %v493
        %v723 = vunpack.c.h.b16 %v493
        %v724 = vunpack.c.l.b16 %v494
        %v725 = vunpack.c.h.b16 %v494
        %v726 = vunpack.c.l.b16 %v495
        %v727 = vunpack.c.h.b16 %v495
        %v728 = vunpack.c.l.b16 %v496
        %v729 = vunpack.c.h.b16 %v496
        %v730 = vunpack.c.l.b16 %v497
        %v731 = vunpack.c.h.b16 %v497
        %v732 = vunpack.c.l.b16 %v498
        %v733 = vunpack.c.h.b16 %v498
        %v734 = vunpack.c.l.b16 %v499
        %v735 = vunpack.c.h.b16 %v499
        %v736 = vunpack.c.l.b16 %v500
        %v737 = vunpack.c.h.b16 %v500
        %v738 = vunpack.c.l.b16 %v501
        %v739 = vunpack.c.h.b16 %v501
        %v740 = vunpack.c.l.b16 %v502
        %v741 = vunpack.c.h.b16 %v502
        %v742 = vunpack.c.l.b16 %v503
        %v743 = vunpack.c.h.b16 %v503
        %v744 = vunpack.c.l.b16 %v504
        %v745 = vunpack.c.h.b16 %v504
        %v746 = vunpack.c.l.b16 %v505
        %v747 = vunpack.c.h.b16 %v505
        %v748 = vunpack.c.l.b16 %v506
        %v749 = vunpack.c.h.b16 %v506
        %v750 = vunpack.c.l.b16 %v507
        %v751 = vunpack.c.h.b16 %v507
        %v752 = vunpack.c.l.b16 %v508
        %v753 = vunpack.c.h.b16 %v508
        %v754 = vunpack.c.l.b16 %v509
        %v755 = vunpack.c.h.b16 %v509
        %v756 = vunpack.c.l.b16 %v510
        %v757 = vunpack.c.h.b16 %v510
        %v758 = vunpack.c.l.b16 %v511
        %v759 = vunpack.c.h.b16 %v511
        %v760 = vunpack.c.l.b16 %v512
        %v761 = vunpack.c.h.b16 %v512
        %v762 = vunpack.c.l.b16 %v513
        %v763 = vunpack.c.h.b16 %v513
        %v764 = vunpack.c.l.b16 %v514
        %v765 = vunpack.c.h.b16 %v514
        %v766 = vunpack.c.l.b16 %v515
        %v767 = vunpack.c.h.b16 %v515
        %v768 = vunpack.c.l.b16 %v516
        %v769 = vunpack.c.h.b16 %v516
        %v770 = vunpack.c.l.b16 %v517
        %v771 = vunpack.c.h.b16 %v517
        %v772 = vunpack.c.l.b16 %v518
        %v773 = vunpack.c.h.b16 %v518
        %v774 = vunpack.c.l.b16 %v519
        %v775 = vunpack.c.h.b16 %v519
        %v776 = vpack.c.b16 %v652, %v648
        %v777 = vpack.c.b16 %v653, %v649
        %v778 = vpack.c.b16 %v654, %v650
        %v779 = vpack.c.b16 %v655, %v651
        %v780 = vpack.c.b16 %v660, %v656
        %v781 = vpack.c.b16 %v661, %v657
        %v782 = vpack.c.b16 %v662, %v658
        %v783 = vpack.c.b16 %v663, %v659
        %v784 = vpack.c.b16 %v668, %v664
        %v785 = vpack.c.b16 %v669, %v665
        %v786 = vpack.c.b16 %v670, %v666
        %v787 = vpack.c.b16 %v671, %v667
        %v788 = vpack.c.b16 %v676, %v672
        %v789 = vpack.c.b16 %v677, %v673
        %v790 = vpack.c.b16 %v678, %v674
        %v791 = vpack.c.b16 %v679, %v675
        %v792 = vpack.c.b16 %v684, %v680
        %v793 = vpack.c.b16 %v685, %v681
        %v794 = vpack.c.b16 %v686, %v682
        %v795 = vpack.c.b16 %v687, %v683
        %v796 = vpack.c.b16 %v692, %v688
        %v797 = vpack.c.b16 %v693, %v689
        %v798 = vpack.c.b16 %v694, %v690
        %v799 = vpack.c.b16 %v695, %v691
        %v800 = vpack.c.b16 %v700, %v696
        %v801 = vpack.c.b16 %v701, %v697
        %v802 = vpack.c.b16 %v702, %v698
        %v803 = vpack.c.b16 %v703, %v699
        %v804 = vpack.c.b16 %v708, %v704
        %v805 = vpack.c.b16 %v709, %v705
        %v806 = vpack.c.b16 %v710, %v706
        %v807 = vpack.c.b16 %v711, %v707
        %v808 = vpack.c.b16 %v716, %v712
        %v809 = vpack.c.b16 %v717, %v713
        %v810 = vpack.c.b16 %v718, %v714
        %v811 = vpack.c.b16 %v719, %v715
        %v812 = vpack.c.b16 %v724, %v720
        %v813 = vpack.c.b16 %v725, %v721
        %v814 = vpack.c.b16 %v726, %v722
        %v815 = vpack.c.b16 %v727, %v723
        %v816 = vpack.c.b16 %v732, %v728
        %v817 = vpack.c.b16 %v733, %v729
        %v818 = vpack.c.b16 %v734, %v730
        %v819 = vpack.c.b16 %v735, %v731
        %v820 = vpack.c.b16 %v740, %v736
        %v821 = vpack.c.b16 %v741, %v737
        %v822 = vpack.c.b16 %v742, %v738
        %v823 = vpack.c.b16 %v743, %v739
        %v824 = vpack.c.b16 %v748, %v744
        %v825 = vpack.c.b16 %v749, %v745
        %v826 = vpack.c.b16 %v750, %v746
        %v827 = vpack.c.b16 %v751, %v747
        %v828 = vpack.c.b16 %v756, %v752
        %v829 = vpack.c.b16 %v757, %v753
        %v830 = vpack.c.b16 %v758, %v754
        %v831 = vpack.c.b16 %v759, %v755
        %v832 = vpack.c.b16 %v764, %v760
        %v833 = vpack.c.b16 %v765, %v761
        %v834 = vpack.c.b16 %v766, %v762
        %v835 = vpack.c.b16 %v767, %v763
        %v836 = vpack.c.b16 %v772, %v768
        %v837 = vpack.c.b16 %v773, %v769
        %v838 = vpack.c.b16 %v774, %v770
        %v839 = vpack.c.b16 %v775, %v771
        %v968 = vunpack.c.l.b16 %v520
        %v969 = vunpack.c.l.b16 %v521
        %v970 = vunpack.c.l.b16 %v522
        %v971 = vunpack.c.l.b16 %v523
        %v972 = vunpack.c.l.b16 %v524
        %v973 = vunpack.c.l.b16 %v525
        %v974 = vunpack.c.l.b16 %v526
        %v975 = vunpack.c.l.b16 %v527
        %v976 = vunpack.c.l.b16 %v528
        %v977 = vunpack.c.l.b16 %v529
        %v978 = vunpack.c.l.b16 %v530
        %v979 = vunpack.c.l.b16 %v531
        %v980 = vunpack.c.l.b16 %v532
        %v981 = vunpack.c.l.b16 %v533
        %v982 = vunpack.c.l.b16 %v534
        %v983 = vunpack.c.l.b16 %v535
        %v984 = vunpack.c.l.b16 %v536
        %v985 = vunpack.c.l.b16 %v537
        %v986 = vunpack.c.l.b16 %v538
        %v987 = vunpack.c.l.b16 %v539
        %v988 = vunpack.c.l.b16 %v540
        %v989 = vunpack.c.l.b16 %v541
        %v990 = vunpack.c.l.b16 %v542
        %v991 = vunpack.c.l.b16 %v543
        %v992 = vunpack.c.l.b16 %v544
        %v993 = vunpack.c.l.b16 %v545
        %v994 = vunpack.c.l.b16 %v546
        %v995 = vunpack.c.l.b16 %v547
        %v996 = vunpack.c.l.b16 %v548
        %v997 = vunpack.c.l.b16 %v549
        %v998 = vunpack.c.l.b16 %v550
        %v999 = vunpack.c.l.b16 %v551
        %v1000 = vunpack.c.l.b16 %v552
        %v1001 = vunpack.c.l.b16 %v553
        %v1002 = vunpack.c.l.b16 %v554
        %v1003 = vunpack.c.l.b16 %v555
        %v1004 = vunpack.c.l.b16 %v556
        %v1005 = vunpack.c.l.b16 %v557
        %v1006 = vunpack.c.l.b16 %v558
        %v1007 = vunpack.c.l.b16 %v559
        %v1008 = vunpack.c.l.b16 %v560
        %v1009 = vunpack.c.l.b16 %v561
        %v1010 = vunpack.c.l.b16 %v562
        %v1011 = vunpack.c.l.b16 %v563
        %v1012 = vunpack.c.l.b16 %v564
        %v1013 = vunpack.c.l.b16 %v565
        %v1014 = vunpack.c.l.b16 %v566
        %v1015 = vunpack.c.l.b16 %v567
        %v1016 = vunpack.c.l.b16 %v568
        %v1017 = vunpack.c.l.b16 %v569
        %v1018 = vunpack.c.l.b16 %v570
        %v1019 = vunpack.c.l.b16 %v571
        %v1020 = vunpack.c.l.b16 %v572
        %v1021 = vunpack.c.l.b16 %v573
        %v1022 = vunpack.c.l.b16 %v574
        %v1023 = vunpack.c.l.b16 %v575
        %v1024 = vunpack.c.l.b16 %v576
        %v1025 = vunpack.c.l.b16 %v577
        %v1026 = vunpack.c.l.b16 %v578
        %v1027 = vunpack.c.l.b16 %v579
        %v1028 = vunpack.c.l.b16 %v580
        %v1029 = vunpack.c.l.b16 %v581
        %v1030 = vunpack.c.l.b16 %v582
        %v1031 = vunpack.c.l.b16 %v583
        %v1032 = vpack.c.b16 %v969, %v968
        %v1033 = vpack.c.b16 %v971, %v970
        %v1034 = vpack.c.b16 %v973, %v972
        %v1035 = vpack.c.b16 %v975, %v974
        %v1036 = vpack.c.b16 %v977, %v976
        %v1037 = vpack.c.b16 %v979, %v978
        %v1038 = vpack.c.b16 %v981, %v980
        %v1039 = vpack.c.b16 %v983, %v982
        %v1040 = vpack.c.b16 %v985, %v984
        %v1041 = vpack.c.b16 %v987, %v986
        %v1042 = vpack.c.b16 %v989, %v988
        %v1043 = vpack.c.b16 %v991, %v990
        %v1044 = vpack.c.b16 %v993, %v992
        %v1045 = vpack.c.b16 %v995, %v994
        %v1046 = vpack.c.b16 %v997, %v996
        %v1047 = vpack.c.b16 %v999, %v998
        %v1048 = vpack.c.b16 %v1001, %v1000
        %v1049 = vpack.c.b16 %v1003, %v1002
        %v1050 = vpack.c.b16 %v1005, %v1004
        %v1051 = vpack.c.b16 %v1007, %v1006
        %v1052 = vpack.c.b16 %v1009, %v1008
        %v1053 = vpack.c.b16 %v1011, %v1010
        %v1054 = vpack.c.b16 %v1013, %v1012
        %v1055 = vpack.c.b16 %v1015, %v1014
        %v1056 = vpack.c.b16 %v1017, %v1016
        %v1057 = vpack.c.b16 %v1019, %v1018
        %v1058 = vpack.c.b16 %v1021, %v1020
        %v1059 = vpack.c.b16 %v1023, %v1022
        %v1060 = vpack.c.b16 %v1025, %v1024
        %v1061 = vpack.c.b16 %v1027, %v1026
        %v1062 = vpack.c.b16 %v1029, %v1028
        %v1063 = vpack.c.b16 %v1031, %v1030
        %1096 = vmatprep.subr.bf16.mxu0 0
        %1097 = vmatpush1.bf16.msra.mxu0 %v1039
        %1098 = vmatprep.subr.bf16.mxu0 0
        %1099 = vmatpush1.bf16.msra.mxu0 %v1038
        %1100 = vmatprep.subr.bf16.mxu0 0
        %1101 = vmatpush1.bf16.msra.mxu0 %v1037
        %1102 = vmatprep.subr.bf16.mxu0 0
        %1103 = vmatpush1.bf16.msra.mxu0 %v1036
        %1104 = vmatprep.subr.bf16.mxu0 0
        %1105 = vmatpush1.bf16.msra.mxu0 %v1035
        %1106 = vmatprep.subr.bf16.mxu0 0
        %1107 = vmatpush1.bf16.msra.mxu0 %v1034
        %1108 = vmatprep.subr.bf16.mxu0 0
        %1109 = vmatpush1.bf16.msra.mxu0 %v1033
        %1110 = vmatprep.subr.bf16.mxu0 0
        %1111 = vmatpush1.bf16.msra.mxu0 %v1032
        %1112 = vmatprep.subr.bf16.mxu0 0
        %1113 = vmatpush2.bf16.msra.mxu0 %v1047
        %1114 = vmatprep.subr.bf16.mxu0 0
        %1115 = vmatpush2.bf16.msra.mxu0 %v1046
        %1116 = vmatprep.subr.bf16.mxu0 0
        %1117 = vmatpush2.bf16.msra.mxu0 %v1045
        %1118 = vmatprep.subr.bf16.mxu0 0
        %1119 = vmatpush2.bf16.msra.mxu0 %v1044
        %1120 = vmatprep.subr.bf16.mxu0 0
        %1121 = vmatpush2.bf16.msra.mxu0 %v1043
        %1122 = vmatprep.subr.bf16.mxu0 0
        %1123 = vmatpush2.bf16.msra.mxu0 %v1042
        %1124 = vmatprep.subr.bf16.mxu0 0
        %1125 = vmatpush2.bf16.msra.mxu0 %v1041
        %1126 = vmatprep.subr.bf16.mxu0 0
        %1127 = vmatpush2.bf16.msra.mxu0 %v1040
        %1128 = vmatprep.mubr.bf16.mxu0 %v777
        %1129 = vmatmul.mubr.bf16.gmra.mxu0 %v776
        %v1130 = vpop.f32.mrf.mxu0
        %v1131 = vadd.f32 0.0, %v1130
        %v1132 = vpop.f32.mrf.mxu0
        %v1133 = vpop.f32.mrf.mxu0
        %v1134 = vadd.f32 0.0, %v1133
        %v1135 = vpop.f32.mrf.mxu0
        %1136 = vmatprep.mubr.bf16.mxu0 %v781
        %1137 = vmatmul.mubr.bf16.gmra.mxu0 %v780
        %v1138 = vpop.f32.mrf.mxu0
        %v1139 = vadd.f32 0.0, %v1138
        %v1140 = vpop.f32.mrf.mxu0
        %v1141 = vpop.f32.mrf.mxu0
        %v1142 = vadd.f32 0.0, %v1141
        %v1143 = vpop.f32.mrf.mxu0
        %1144 = vmatprep.mubr.bf16.mxu0 %v785
        %1145 = vmatmul.mubr.bf16.gmra.mxu0 %v784
        %v1146 = vpop.f32.mrf.mxu0
        %v1147 = vadd.f32 0.0, %v1146
        %v1148 = vpop.f32.mrf.mxu0
        %v1149 = vpop.f32.mrf.mxu0
        %v1150 = vadd.f32 0.0, %v1149
        %v1151 = vpop.f32.mrf.mxu0
        %1152 = vmatprep.mubr.bf16.mxu0 %v789
        %1153 = vmatmul.mubr.bf16.gmra.mxu0 %v788
        %v1154 = vpop.f32.mrf.mxu0
        %v1155 = vadd.f32 0.0, %v1154
        %v1156 = vpop.f32.mrf.mxu0
        %v1157 = vpop.f32.mrf.mxu0
        %v1158 = vadd.f32 0.0, %v1157
        %v1159 = vpop.f32.mrf.mxu0
        %1160 = vmatprep.mubr.bf16.mxu0 %v793
        %1161 = vmatmul.mubr.bf16.gmra.mxu0 %v792
        %v1162 = vpop.f32.mrf.mxu0
        %v1163 = vadd.f32 0.0, %v1162
        %v1164 = vpop.f32.mrf.mxu0
        %v1165 = vpop.f32.mrf.mxu0
        %v1166 = vadd.f32 0.0, %v1165
        %v1167 = vpop.f32.mrf.mxu0
        %1168 = vmatprep.mubr.bf16.mxu0 %v797
        %1169 = vmatmul.mubr.bf16.gmra.mxu0 %v796
        %v1170 = vpop.f32.mrf.mxu0
        %v1171 = vadd.f32 0.0, %v1170
        %v1172 = vpop.f32.mrf.mxu0
        %v1173 = vpop.f32.mrf.mxu0
        %v1174 = vadd.f32 0.0, %v1173
        %v1175 = vpop.f32.mrf.mxu0
        %1176 = vmatprep.mubr.bf16.mxu0 %v801
        %1177 = vmatmul.mubr.bf16.gmra.mxu0 %v800
        %v1178 = vpop.f32.mrf.mxu0
        %v1179 = vadd.f32 0.0, %v1178
        %v1180 = vpop.f32.mrf.mxu0
        %v1181 = vpop.f32.mrf.mxu0
        %v1182 = vadd.f32 0.0, %v1181
        %v1183 = vpop.f32.mrf.mxu0
        %1184 = vmatprep.mubr.bf16.mxu0 %v805
        %1185 = vmatmul.mubr.bf16.gmra.mxu0 %v804
        %v1186 = vpop.f32.mrf.mxu0
        %v1187 = vadd.f32 0.0, %v1186
        %v1188 = vpop.f32.mrf.mxu0
        %v1189 = vpop.f32.mrf.mxu0
        %v1190 = vadd.f32 0.0, %v1189
        %v1191 = vpop.f32.mrf.mxu0
        %1192 = vmatprep.mubr.bf16.mxu0 %v809
        %1193 = vmatmul.mubr.bf16.gmra.mxu0 %v808
        %v1194 = vpop.f32.mrf.mxu0
        %v1195 = vadd.f32 0.0, %v1194
        %v1196 = vpop.f32.mrf.mxu0
        %v1197 = vpop.f32.mrf.mxu0
        %v1198 = vadd.f32 0.0, %v1197
        %v1199 = vpop.f32.mrf.mxu0
        %1200 = vmatprep.mubr.bf16.mxu0 %v813
        %1201 = vmatmul.mubr.bf16.gmra.mxu0 %v812
        %v1202 = vpop.f32.mrf.mxu0
        %v1203 = vadd.f32 0.0, %v1202
        %v1204 = vpop.f32.mrf.mxu0
        %v1205 = vpop.f32.mrf.mxu0
        %v1206 = vadd.f32 0.0, %v1205
        %v1207 = vpop.f32.mrf.mxu0
        %1208 = vmatprep.mubr.bf16.mxu0 %v817
        %1209 = vmatmul.mubr.bf16.gmra.mxu0 %v816
        %v1210 = vpop.f32.mrf.mxu0
        %v1211 = vadd.f32 0.0, %v1210
        %v1212 = vpop.f32.mrf.mxu0
        %v1213 = vpop.f32.mrf.mxu0
        %v1214 = vadd.f32 0.0, %v1213
        %v1215 = vpop.f32.mrf.mxu0
        %1216 = vmatprep.mubr.bf16.mxu0 %v821
        %1217 = vmatmul.mubr.bf16.gmra.mxu0 %v820
        %v1218 = vpop.f32.mrf.mxu0
        %v1219 = vadd.f32 0.0, %v1218
        %v1220 = vpop.f32.mrf.mxu0
        %v1221 = vpop.f32.mrf.mxu0
        %v1222 = vadd.f32 0.0, %v1221
        %v1223 = vpop.f32.mrf.mxu0
        %1224 = vmatprep.mubr.bf16.mxu0 %v825
        %1225 = vmatmul.mubr.bf16.gmra.mxu0 %v824
        %v1226 = vpop.f32.mrf.mxu0
        %v1227 = vadd.f32 0.0, %v1226
        %v1228 = vpop.f32.mrf.mxu0
        %v1229 = vpop.f32.mrf.mxu0
        %v1230 = vadd.f32 0.0, %v1229
        %v1231 = vpop.f32.mrf.mxu0
        %1232 = vmatprep.mubr.bf16.mxu0 %v829
        %1233 = vmatmul.mubr.bf16.gmra.mxu0 %v828
        %v1234 = vpop.f32.mrf.mxu0
        %v1235 = vadd.f32 0.0, %v1234
        %v1236 = vpop.f32.mrf.mxu0
        %v1237 = vpop.f32.mrf.mxu0
        %v1238 = vadd.f32 0.0, %v1237
        %v1239 = vpop.f32.mrf.mxu0
        %1240 = vmatprep.mubr.bf16.mxu0 %v833
        %1241 = vmatmul.mubr.bf16.gmra.mxu0 %v832
        %v1242 = vpop.f32.mrf.mxu0
        %v1243 = vadd.f32 0.0, %v1242
        %v1244 = vpop.f32.mrf.mxu0
        %v1245 = vpop.f32.mrf.mxu0
        %v1246 = vadd.f32 0.0, %v1245
        %v1247 = vpop.f32.mrf.mxu0
        %1248 = vmatprep.mubr.bf16.mxu0 %v837
        %1249 = vmatmul.mubr.bf16.gmra.mxu0 %v836
        %v1250 = vpop.f32.mrf.mxu0
        %v1251 = vadd.f32 0.0, %v1250
        %v1252 = vpop.f32.mrf.mxu0
        %v1253 = vpop.f32.mrf.mxu0
        %v1254 = vadd.f32 0.0, %v1253
        %v1255 = vpop.f32.mrf.mxu0
        %1256 = vdwg.mxu0
        %1257 = vmatprep.subr.bf16.mxu0 0
        %1258 = vmatpush1.bf16.msra.mxu0 %v1055
        %1259 = vmatprep.subr.bf16.mxu0 0
        %1260 = vmatpush1.bf16.msra.mxu0 %v1054
        %1261 = vmatprep.subr.bf16.mxu0 0
        %1262 = vmatpush1.bf16.msra.mxu0 %v1053
        %1263 = vmatprep.subr.bf16.mxu0 0
        %1264 = vmatpush1.bf16.msra.mxu0 %v1052
        %1265 = vmatprep.subr.bf16.mxu0 0
        %1266 = vmatpush1.bf16.msra.mxu0 %v1051
        %1267 = vmatprep.subr.bf16.mxu0 0
        %1268 = vmatpush1.bf16.msra.mxu0 %v1050
        %1269 = vmatprep.subr.bf16.mxu0 0
        %1270 = vmatpush1.bf16.msra.mxu0 %v1049
        %1271 = vmatprep.subr.bf16.mxu0 0
        %1272 = vmatpush1.bf16.msra.mxu0 %v1048
        %1273 = vmatprep.subr.bf16.mxu0 0
        %1274 = vmatpush2.bf16.msra.mxu0 %v1063
        %1275 = vmatprep.subr.bf16.mxu0 0
        %1276 = vmatpush2.bf16.msra.mxu0 %v1062
        %1277 = vmatprep.subr.bf16.mxu0 0
        %1278 = vmatpush2.bf16.msra.mxu0 %v1061
        %1279 = vmatprep.subr.bf16.mxu0 0
        %1280 = vmatpush2.bf16.msra.mxu0 %v1060
        %1281 = vmatprep.subr.bf16.mxu0 0
        %1282 = vmatpush2.bf16.msra.mxu0 %v1059
        %1283 = vmatprep.subr.bf16.mxu0 0
        %1284 = vmatpush2.bf16.msra.mxu0 %v1058
        %1285 = vmatprep.subr.bf16.mxu0 0
        %1286 = vmatpush2.bf16.msra.mxu0 %v1057
        %1287 = vmatprep.subr.bf16.mxu0 0
        %1288 = vmatpush2.bf16.msra.mxu0 %v1056
        %1289 = vmatprep.mubr.bf16.mxu0 %v779
        %1290 = vmatmul.mubr.bf16.gmra.mxu0 %v778
        %v1291 = vpop.f32.mrf.mxu0
        %v1292 = vadd.f32 %v1131, %v1291
        %v1293 = vpop.f32.mrf.mxu0
        %v1294 = vpop.f32.mrf.mxu0
        %v1295 = vadd.f32 %v1134, %v1294
        %v1296 = vpop.f32.mrf.mxu0
        %1297 = vmatprep.mubr.bf16.mxu0 %v783
        %1298 = vmatmul.mubr.bf16.gmra.mxu0 %v782
        %v1299 = vpop.f32.mrf.mxu0
        %v1300 = vadd.f32 %v1139, %v1299
        %v1301 = vpop.f32.mrf.mxu0
        %v1302 = vpop.f32.mrf.mxu0
        %v1303 = vadd.f32 %v1142, %v1302
        %v1304 = vpop.f32.mrf.mxu0
        %1305 = vmatprep.mubr.bf16.mxu0 %v787
        %1306 = vmatmul.mubr.bf16.gmra.mxu0 %v786
        %v1307 = vpop.f32.mrf.mxu0
        %v1308 = vadd.f32 %v1147, %v1307
        %v1309 = vpop.f32.mrf.mxu0
        %v1310 = vpop.f32.mrf.mxu0
        %v1311 = vadd.f32 %v1150, %v1310
        %v1312 = vpop.f32.mrf.mxu0
        %1313 = vmatprep.mubr.bf16.mxu0 %v791
        %1314 = vmatmul.mubr.bf16.gmra.mxu0 %v790
        %v1315 = vpop.f32.mrf.mxu0
        %v1316 = vadd.f32 %v1155, %v1315
        %v1317 = vpop.f32.mrf.mxu0
        %v1318 = vpop.f32.mrf.mxu0
        %v1319 = vadd.f32 %v1158, %v1318
        %v1320 = vpop.f32.mrf.mxu0
        %1321 = vmatprep.mubr.bf16.mxu0 %v795
        %1322 = vmatmul.mubr.bf16.gmra.mxu0 %v794
        %v1323 = vpop.f32.mrf.mxu0
        %v1324 = vadd.f32 %v1163, %v1323
        %v1325 = vpop.f32.mrf.mxu0
        %v1326 = vpop.f32.mrf.mxu0
        %v1327 = vadd.f32 %v1166, %v1326
        %v1328 = vpop.f32.mrf.mxu0
        %1329 = vmatprep.mubr.bf16.mxu0 %v799
        %1330 = vmatmul.mubr.bf16.gmra.mxu0 %v798
        %v1331 = vpop.f32.mrf.mxu0
        %v1332 = vadd.f32 %v1171, %v1331
        %v1333 = vpop.f32.mrf.mxu0
        %v1334 = vpop.f32.mrf.mxu0
        %v1335 = vadd.f32 %v1174, %v1334
        %v1336 = vpop.f32.mrf.mxu0
        %1337 = vmatprep.mubr.bf16.mxu0 %v803
        %1338 = vmatmul.mubr.bf16.gmra.mxu0 %v802
        %v1339 = vpop.f32.mrf.mxu0
        %v1340 = vadd.f32 %v1179, %v1339
        %v1341 = vpop.f32.mrf.mxu0
        %v1342 = vpop.f32.mrf.mxu0
        %v1343 = vadd.f32 %v1182, %v1342
        %v1344 = vpop.f32.mrf.mxu0
        %1345 = vmatprep.mubr.bf16.mxu0 %v807
        %1346 = vmatmul.mubr.bf16.gmra.mxu0 %v806
        %v1347 = vpop.f32.mrf.mxu0
        %v1348 = vadd.f32 %v1187, %v1347
        %v1349 = vpop.f32.mrf.mxu0
        %v1350 = vpop.f32.mrf.mxu0
        %v1351 = vadd.f32 %v1190, %v1350
        %v1352 = vpop.f32.mrf.mxu0
        %1353 = vmatprep.mubr.bf16.mxu0 %v811
        %1354 = vmatmul.mubr.bf16.gmra.mxu0 %v810
        %v1355 = vpop.f32.mrf.mxu0
        %v1356 = vadd.f32 %v1195, %v1355
        %v1357 = vpop.f32.mrf.mxu0
        %v1358 = vpop.f32.mrf.mxu0
        %v1359 = vadd.f32 %v1198, %v1358
        %v1360 = vpop.f32.mrf.mxu0
        %1361 = vmatprep.mubr.bf16.mxu0 %v815
        %1362 = vmatmul.mubr.bf16.gmra.mxu0 %v814
        %v1363 = vpop.f32.mrf.mxu0
        %v1364 = vadd.f32 %v1203, %v1363
        %v1365 = vpop.f32.mrf.mxu0
        %v1366 = vpop.f32.mrf.mxu0
        %v1367 = vadd.f32 %v1206, %v1366
        %v1368 = vpop.f32.mrf.mxu0
        %1369 = vmatprep.mubr.bf16.mxu0 %v819
        %1370 = vmatmul.mubr.bf16.gmra.mxu0 %v818
        %v1371 = vpop.f32.mrf.mxu0
        %v1372 = vadd.f32 %v1211, %v1371
        %v1373 = vpop.f32.mrf.mxu0
        %v1374 = vpop.f32.mrf.mxu0
        %v1375 = vadd.f32 %v1214, %v1374
        %v1376 = vpop.f32.mrf.mxu0
        %1377 = vmatprep.mubr.bf16.mxu0 %v823
        %1378 = vmatmul.mubr.bf16.gmra.mxu0 %v822
        %v1379 = vpop.f32.mrf.mxu0
        %v1380 = vadd.f32 %v1219, %v1379
        %v1381 = vpop.f32.mrf.mxu0
        %v1382 = vpop.f32.mrf.mxu0
        %v1383 = vadd.f32 %v1222, %v1382
        %v1384 = vpop.f32.mrf.mxu0
        %1385 = vmatprep.mubr.bf16.mxu0 %v827
        %1386 = vmatmul.mubr.bf16.gmra.mxu0 %v826
        %v1387 = vpop.f32.mrf.mxu0
        %v1388 = vadd.f32 %v1227, %v1387
        %v1389 = vpop.f32.mrf.mxu0
        %v1390 = vpop.f32.mrf.mxu0
        %v1391 = vadd.f32 %v1230, %v1390
        %v1392 = vpop.f32.mrf.mxu0
        %1393 = vmatprep.mubr.bf16.mxu0 %v831
        %1394 = vmatmul.mubr.bf16.gmra.mxu0 %v830
        %v1395 = vpop.f32.mrf.mxu0
        %v1396 = vadd.f32 %v1235, %v1395
        %v1397 = vpop.f32.mrf.mxu0
        %v1398 = vpop.f32.mrf.mxu0
        %v1399 = vadd.f32 %v1238, %v1398
        %v1400 = vpop.f32.mrf.mxu0
        %1401 = vmatprep.mubr.bf16.mxu0 %v835
        %1402 = vmatmul.mubr.bf16.gmra.mxu0 %v834
        %v1403 = vpop.f32.mrf.mxu0
        %v1404 = vadd.f32 %v1243, %v1403
        %v1405 = vpop.f32.mrf.mxu0
        %v1406 = vpop.f32.mrf.mxu0
        %v1407 = vadd.f32 %v1246, %v1406
        %v1408 = vpop.f32.mrf.mxu0
        %1409 = vmatprep.mubr.bf16.mxu0 %v839
        %1410 = vmatmul.mubr.bf16.gmra.mxu0 %v838
        %v1411 = vpop.f32.mrf.mxu0
        %v1412 = vadd.f32 %v1251, %v1411
        %v1413 = vpop.f32.mrf.mxu0
        %v1414 = vpop.f32.mrf.mxu0
        %v1415 = vadd.f32 %v1254, %v1414
        %v1416 = vpop.f32.mrf.mxu0
        %1417 = vdwg.mxu0
        %v1418 = vadd.f32 %v424, %v1292
        %v1419 = vadd.f32 %v425, %v1295
        %v1420 = vadd.f32 %v426, %v1300
        %v1421 = vadd.f32 %v427, %v1303
        %v1422 = vadd.f32 %v428, %v1308
        %v1423 = vadd.f32 %v429, %v1311
        %v1424 = vadd.f32 %v430, %v1316
        %v1425 = vadd.f32 %v431, %v1319
        %v1426 = vadd.f32 %v432, %v1324
        %v1427 = vadd.f32 %v433, %v1327
        %v1428 = vadd.f32 %v434, %v1332
        %v1429 = vadd.f32 %v435, %v1335
        %v1430 = vadd.f32 %v436, %v1340
        %v1431 = vadd.f32 %v437, %v1343
        %v1432 = vadd.f32 %v438, %v1348
        %v1433 = vadd.f32 %v439, %v1351
        %v1434 = vadd.f32 %v440, %v1356
        %v1435 = vadd.f32 %v441, %v1359
        %v1436 = vadd.f32 %v442, %v1364
        %v1437 = vadd.f32 %v443, %v1367
        %v1438 = vadd.f32 %v444, %v1372
        %v1439 = vadd.f32 %v445, %v1375
        %v1440 = vadd.f32 %v446, %v1380
        %v1441 = vadd.f32 %v447, %v1383
        %v1442 = vadd.f32 %v448, %v1388
        %v1443 = vadd.f32 %v449, %v1391
        %v1444 = vadd.f32 %v450, %v1396
        %v1445 = vadd.f32 %v451, %v1399
        %v1446 = vadd.f32 %v452, %v1404
        %v1447 = vadd.f32 %v453, %v1407
        %v1448 = vadd.f32 %v454, %v1412
        %v1449 = vadd.f32 %v455, %v1415
        %1450 = vst [vmem:[#allocation2] sm:$0xff] %v1418
        %1451 = vst [vmem:[#allocation2 + $0x8] sm:$0xff] %v1419
        %1452 = vst [vmem:[#allocation2 + $0x10] sm:$0xff] %v1420
        %1453 = vst [vmem:[#allocation2 + $0x18] sm:$0xff] %v1421
        %1454 = vst [vmem:[#allocation2 + $0x20] sm:$0xff] %v1422
        %1455 = vst [vmem:[#allocation2 + $0x28] sm:$0xff] %v1423
        %1456 = vst [vmem:[#allocation2 + $0x30] sm:$0xff] %v1424
        %1457 = vst [vmem:[#allocation2 + $0x38] sm:$0xff] %v1425
        %1458 = vst [vmem:[#allocation2 + $0x40] sm:$0xff] %v1426
        %1459 = vst [vmem:[#allocation2 + $0x48] sm:$0xff] %v1427
        %1460 = vst [vmem:[#allocation2 + $0x50] sm:$0xff] %v1428
        %1461 = vst [vmem:[#allocation2 + $0x58] sm:$0xff] %v1429
        %1462 = vst [vmem:[#allocation2 + $0x60] sm:$0xff] %v1430
        %1463 = vst [vmem:[#allocation2 + $0x68] sm:$0xff] %v1431
        %1464 = vst [vmem:[#allocation2 + $0x70] sm:$0xff] %v1432
        %1465 = vst [vmem:[#allocation2 + $0x78] sm:$0xff] %v1433
        %1466 = vst [vmem:[#allocation2 + $0x80] sm:$0xff] %v1434
        %1467 = vst [vmem:[#allocation2 + $0x88] sm:$0xff] %v1435
        %1468 = vst [vmem:[#allocation2 + $0x90] sm:$0xff] %v1436
        %1469 = vst [vmem:[#allocation2 + $0x98] sm:$0xff] %v1437
        %1470 = vst [vmem:[#allocation2 + $0xa0] sm:$0xff] %v1438
        %1471 = vst [vmem:[#allocation2 + $0xa8] sm:$0xff] %v1439
        %1472 = vst [vmem:[#allocation2 + $0xb0] sm:$0xff] %v1440
        %1473 = vst [vmem:[#allocation2 + $0xb8] sm:$0xff] %v1441
        %1474 = vst [vmem:[#allocation2 + $0xc0] sm:$0xff] %v1442
        %1475 = vst [vmem:[#allocation2 + $0xc8] sm:$0xff] %v1443
        %1476 = vst [vmem:[#allocation2 + $0xd0] sm:$0xff] %v1444
        %1477 = vst [vmem:[#allocation2 + $0xd8] sm:$0xff] %v1445
        %1478 = vst [vmem:[#allocation2 + $0xe0] sm:$0xff] %v1446
        %1479 = vst [vmem:[#allocation2 + $0xe8] sm:$0xff] %v1447
        %1480 = vst [vmem:[#allocation2 + $0xf0] sm:$0xff] %v1448
        %1481 = vst [vmem:[#allocation2 + $0xf8] sm:$0xff] %v1449
        // Predicated region
        $region65: #{tpu_custom_call.1} parent=43 // pred_check
          %p1482 = pneg %p388
        $region66: #{tpu_custom_call.1} parent=43 // pred_check_branch
          %1484 = sbr.rel (%p1482) target = $region68
        $region67: #{tpu_custom_call.1} parent=43 // pred_region
          %v1485 = vld [vmem:[#allocation2] sm:$0xff]
          %v1486 = vld [vmem:[#allocation2 + $0x8] sm:$0xff]
          %v1487 = vld [vmem:[#allocation2 + $0x10] sm:$0xff]
          %v1488 = vld [vmem:[#allocation2 + $0x18] sm:$0xff]
          %v1489 = vld [vmem:[#allocation2 + $0x20] sm:$0xff]
          %v1490 = vld [vmem:[#allocation2 + $0x28] sm:$0xff]
          %v1491 = vld [vmem:[#allocation2 + $0x30] sm:$0xff]
          %v1492 = vld [vmem:[#allocation2 + $0x38] sm:$0xff]
          %v1493 = vld [vmem:[#allocation2 + $0x40] sm:$0xff]
          %v1494 = vld [vmem:[#allocation2 + $0x48] sm:$0xff]
          %v1495 = vld [vmem:[#allocation2 + $0x50] sm:$0xff]
          %v1496 = vld [vmem:[#allocation2 + $0x58] sm:$0xff]
          %v1497 = vld [vmem:[#allocation2 + $0x60] sm:$0xff]
          %v1498 = vld [vmem:[#allocation2 + $0x68] sm:$0xff]
          %v1499 = vld [vmem:[#allocation2 + $0x70] sm:$0xff]
          %v1500 = vld [vmem:[#allocation2 + $0x78] sm:$0xff]
          %v1501 = vld [vmem:[#allocation2 + $0x80] sm:$0xff]
          %v1502 = vld [vmem:[#allocation2 + $0x88] sm:$0xff]
          %v1503 = vld [vmem:[#allocation2 + $0x90] sm:$0xff]
          %v1504 = vld [vmem:[#allocation2 + $0x98] sm:$0xff]
          %v1505 = vld [vmem:[#allocation2 + $0xa0] sm:$0xff]
          %v1506 = vld [vmem:[#allocation2 + $0xa8] sm:$0xff]
          %v1507 = vld [vmem:[#allocation2 + $0xb0] sm:$0xff]
          %v1508 = vld [vmem:[#allocation2 + $0xb8] sm:$0xff]
          %v1509 = vld [vmem:[#allocation2 + $0xc0] sm:$0xff]
          %v1510 = vld [vmem:[#allocation2 + $0xc8] sm:$0xff]
          %v1511 = vld [vmem:[#allocation2 + $0xd0] sm:$0xff]
          %v1512 = vld [vmem:[#allocation2 + $0xd8] sm:$0xff]
          %v1513 = vld [vmem:[#allocation2 + $0xe0] sm:$0xff]
          %v1514 = vld [vmem:[#allocation2 + $0xe8] sm:$0xff]
          %v1515 = vld [vmem:[#allocation2 + $0xf0] sm:$0xff]
          %v1516 = vld [vmem:[#allocation2 + $0xf8] sm:$0xff]
          %v1517 = vld [vmem:[%s384] sm:$0xff]
          %v1518 = vld [vmem:[%s384 + $0x8] sm:$0xff]
          %v1519 = vld [vmem:[%s384 + $0x10] sm:$0xff]
          %v1520 = vld [vmem:[%s384 + $0x18] sm:$0xff]
          %v1521 = vld [vmem:[%s384 + $0x20] sm:$0xff]
          %v1522 = vld [vmem:[%s384 + $0x28] sm:$0xff]
          %v1523 = vld [vmem:[%s384 + $0x30] sm:$0xff]
          %v1524 = vld [vmem:[%s384 + $0x38] sm:$0xff]
          %v1525 = vld [vmem:[%s384 + $0x40] sm:$0xff]
          %v1526 = vld [vmem:[%s384 + $0x48] sm:$0xff]
          %v1527 = vld [vmem:[%s384 + $0x50] sm:$0xff]
          %v1528 = vld [vmem:[%s384 + $0x58] sm:$0xff]
          %v1529 = vld [vmem:[%s384 + $0x60] sm:$0xff]
          %v1530 = vld [vmem:[%s384 + $0x68] sm:$0xff]
          %v1531 = vld [vmem:[%s384 + $0x70] sm:$0xff]
          %v1532 = vld [vmem:[%s384 + $0x78] sm:$0xff]
          %v1533 = vld [vmem:[%s384 + $0x80] sm:$0xff]
          %v1534 = vld [vmem:[%s384 + $0x88] sm:$0xff]
          %v1535 = vld [vmem:[%s384 + $0x90] sm:$0xff]
          %v1536 = vld [vmem:[%s384 + $0x98] sm:$0xff]
          %v1537 = vld [vmem:[%s384 + $0xa0] sm:$0xff]
          %v1538 = vld [vmem:[%s384 + $0xa8] sm:$0xff]
          %v1539 = vld [vmem:[%s384 + $0xb0] sm:$0xff]
          %v1540 = vld [vmem:[%s384 + $0xb8] sm:$0xff]
          %v1541 = vld [vmem:[%s384 + $0xc0] sm:$0xff]
          %v1542 = vld [vmem:[%s384 + $0xc8] sm:$0xff]
          %v1543 = vld [vmem:[%s384 + $0xd0] sm:$0xff]
          %v1544 = vld [vmem:[%s384 + $0xd8] sm:$0xff]
          %v1545 = vld [vmem:[%s384 + $0xe0] sm:$0xff]
          %v1546 = vld [vmem:[%s384 + $0xe8] sm:$0xff]
          %v1547 = vld [vmem:[%s384 + $0xf0] sm:$0xff]
          %v1548 = vld [vmem:[%s384 + $0xf8] sm:$0xff]
          %1550 = vset.pattern.permute.xlu0 0
          %1551 = vperm.xlu0 %1550, %v1517
          %v1552 = vpop.permute.xlu0 %1551
          %1555 = vset.pattern.permute.xlu0 0
          %1556 = vperm.xlu0 %1555, %v1518
          %v1557 = vpop.permute.xlu0 %1556
          %1560 = vset.pattern.permute.xlu0 0
          %1561 = vperm.xlu0 %1560, %v1519
          %v1562 = vpop.permute.xlu0 %1561
          %1565 = vset.pattern.permute.xlu0 0
          %1566 = vperm.xlu0 %1565, %v1520
          %v1567 = vpop.permute.xlu0 %1566
          %1570 = vset.pattern.permute.xlu0 0
          %1571 = vperm.xlu0 %1570, %v1521
          %v1572 = vpop.permute.xlu0 %1571
          %1575 = vset.pattern.permute.xlu0 0
          %1576 = vperm.xlu0 %1575, %v1522
          %v1577 = vpop.permute.xlu0 %1576
          %1580 = vset.pattern.permute.xlu0 0
          %1581 = vperm.xlu0 %1580, %v1523
          %v1582 = vpop.permute.xlu0 %1581
          %1585 = vset.pattern.permute.xlu0 0
          %1586 = vperm.xlu0 %1585, %v1524
          %v1587 = vpop.permute.xlu0 %1586
          %1590 = vset.pattern.permute.xlu0 0
          %1591 = vperm.xlu0 %1590, %v1525
          %v1592 = vpop.permute.xlu0 %1591
          %1595 = vset.pattern.permute.xlu0 0
          %1596 = vperm.xlu0 %1595, %v1526
          %v1597 = vpop.permute.xlu0 %1596
          %1600 = vset.pattern.permute.xlu0 0
          %1601 = vperm.xlu0 %1600, %v1527
          %v1602 = vpop.permute.xlu0 %1601
          %1605 = vset.pattern.permute.xlu0 0
          %1606 = vperm.xlu0 %1605, %v1528
          %v1607 = vpop.permute.xlu0 %1606
          %1610 = vset.pattern.permute.xlu0 0
          %1611 = vperm.xlu0 %1610, %v1529
          %v1612 = vpop.permute.xlu0 %1611
          %1615 = vset.pattern.permute.xlu0 0
          %1616 = vperm.xlu0 %1615, %v1530
          %v1617 = vpop.permute.xlu0 %1616
          %1620 = vset.pattern.permute.xlu0 0
          %1621 = vperm.xlu0 %1620, %v1531
          %v1622 = vpop.permute.xlu0 %1621
          %1625 = vset.pattern.permute.xlu0 0
          %1626 = vperm.xlu0 %1625, %v1532
          %v1627 = vpop.permute.xlu0 %1626
          %1630 = vset.pattern.permute.xlu0 0
          %1631 = vperm.xlu0 %1630, %v1533
          %v1632 = vpop.permute.xlu0 %1631
          %1635 = vset.pattern.permute.xlu0 0
          %1636 = vperm.xlu0 %1635, %v1534
          %v1637 = vpop.permute.xlu0 %1636
          %1640 = vset.pattern.permute.xlu0 0
          %1641 = vperm.xlu0 %1640, %v1535
          %v1642 = vpop.permute.xlu0 %1641
          %1645 = vset.pattern.permute.xlu0 0
          %1646 = vperm.xlu0 %1645, %v1536
          %v1647 = vpop.permute.xlu0 %1646
          %1650 = vset.pattern.permute.xlu0 0
          %1651 = vperm.xlu0 %1650, %v1537
          %v1652 = vpop.permute.xlu0 %1651
          %1655 = vset.pattern.permute.xlu0 0
          %1656 = vperm.xlu0 %1655, %v1538
          %v1657 = vpop.permute.xlu0 %1656
          %1660 = vset.pattern.permute.xlu0 0
          %1661 = vperm.xlu0 %1660, %v1539
          %v1662 = vpop.permute.xlu0 %1661
          %1665 = vset.pattern.permute.xlu0 0
          %1666 = vperm.xlu0 %1665, %v1540
          %v1667 = vpop.permute.xlu0 %1666
          %1670 = vset.pattern.permute.xlu0 0
          %1671 = vperm.xlu0 %1670, %v1541
          %v1672 = vpop.permute.xlu0 %1671
          %1675 = vset.pattern.permute.xlu0 0
          %1676 = vperm.xlu0 %1675, %v1542
          %v1677 = vpop.permute.xlu0 %1676
          %1680 = vset.pattern.permute.xlu0 0
          %1681 = vperm.xlu0 %1680, %v1543
          %v1682 = vpop.permute.xlu0 %1681
          %1685 = vset.pattern.permute.xlu0 0
          %1686 = vperm.xlu0 %1685, %v1544
          %v1687 = vpop.permute.xlu0 %1686
          %1690 = vset.pattern.permute.xlu0 0
          %1691 = vperm.xlu0 %1690, %v1545
          %v1692 = vpop.permute.xlu0 %1691
          %1695 = vset.pattern.permute.xlu0 0
          %1696 = vperm.xlu0 %1695, %v1546
          %v1697 = vpop.permute.xlu0 %1696
          %1700 = vset.pattern.permute.xlu0 0
          %1701 = vperm.xlu0 %1700, %v1547
          %v1702 = vpop.permute.xlu0 %1701
          %1705 = vset.pattern.permute.xlu0 0
          %1706 = vperm.xlu0 %1705, %v1548
          %v1707 = vpop.permute.xlu0 %1706
          %v1709 = vmul.f32 %v1485, %v1552
          %v1710 = vmul.f32 %v1486, %v1557
          %v1711 = vmul.f32 %v1487, %v1562
          %v1712 = vmul.f32 %v1488, %v1567
          %v1713 = vmul.f32 %v1489, %v1572
          %v1714 = vmul.f32 %v1490, %v1577
          %v1715 = vmul.f32 %v1491, %v1582
          %v1716 = vmul.f32 %v1492, %v1587
          %v1717 = vmul.f32 %v1493, %v1592
          %v1718 = vmul.f32 %v1494, %v1597
          %v1719 = vmul.f32 %v1495, %v1602
          %v1720 = vmul.f32 %v1496, %v1607
          %v1721 = vmul.f32 %v1497, %v1612
          %v1722 = vmul.f32 %v1498, %v1617
          %v1723 = vmul.f32 %v1499, %v1622
          %v1724 = vmul.f32 %v1500, %v1627
          %v1725 = vmul.f32 %v1501, %v1632
          %v1726 = vmul.f32 %v1502, %v1637
          %v1727 = vmul.f32 %v1503, %v1642
          %v1728 = vmul.f32 %v1504, %v1647
          %v1729 = vmul.f32 %v1505, %v1652
          %v1730 = vmul.f32 %v1506, %v1657
          %v1731 = vmul.f32 %v1507, %v1662
          %v1732 = vmul.f32 %v1508, %v1667
          %v1733 = vmul.f32 %v1509, %v1672
          %v1734 = vmul.f32 %v1510, %v1677
          %v1735 = vmul.f32 %v1511, %v1682
          %v1736 = vmul.f32 %v1512, %v1687
          %v1737 = vmul.f32 %v1513, %v1692
          %v1738 = vmul.f32 %v1514, %v1697
          %v1739 = vmul.f32 %v1515, %v1702
          %v1740 = vmul.f32 %v1516, %v1707
          %v1741 = vld [vmem:[%s378] sm:$0xff]
          %v1742 = vld [vmem:[%s378 + $0x8] sm:$0xff]
          %v1743 = vld [vmem:[%s378 + $0x10] sm:$0xff]
          %v1744 = vld [vmem:[%s378 + $0x18] sm:$0xff]
          %v1745 = vld [vmem:[%s378 + $0x20] sm:$0xff]
          %v1746 = vld [vmem:[%s378 + $0x28] sm:$0xff]
          %v1747 = vld [vmem:[%s378 + $0x30] sm:$0xff]
          %v1748 = vld [vmem:[%s378 + $0x38] sm:$0xff]
          %v1749 = vld [vmem:[%s378 + $0x40] sm:$0xff]
          %v1750 = vld [vmem:[%s378 + $0x48] sm:$0xff]
          %v1751 = vld [vmem:[%s378 + $0x50] sm:$0xff]
          %v1752 = vld [vmem:[%s378 + $0x58] sm:$0xff]
          %v1753 = vld [vmem:[%s378 + $0x60] sm:$0xff]
          %v1754 = vld [vmem:[%s378 + $0x68] sm:$0xff]
          %v1755 = vld [vmem:[%s378 + $0x70] sm:$0xff]
          %v1756 = vld [vmem:[%s378 + $0x78] sm:$0xff]
          %v1757 = vld [vmem:[%s378 + $0x80] sm:$0xff]
          %v1758 = vld [vmem:[%s378 + $0x88] sm:$0xff]
          %v1759 = vld [vmem:[%s378 + $0x90] sm:$0xff]
          %v1760 = vld [vmem:[%s378 + $0x98] sm:$0xff]
          %v1761 = vld [vmem:[%s378 + $0xa0] sm:$0xff]
          %v1762 = vld [vmem:[%s378 + $0xa8] sm:$0xff]
          %v1763 = vld [vmem:[%s378 + $0xb0] sm:$0xff]
          %v1764 = vld [vmem:[%s378 + $0xb8] sm:$0xff]
          %v1765 = vld [vmem:[%s378 + $0xc0] sm:$0xff]
          %v1766 = vld [vmem:[%s378 + $0xc8] sm:$0xff]
          %v1767 = vld [vmem:[%s378 + $0xd0] sm:$0xff]
          %v1768 = vld [vmem:[%s378 + $0xd8] sm:$0xff]
          %v1769 = vld [vmem:[%s378 + $0xe0] sm:$0xff]
          %v1770 = vld [vmem:[%s378 + $0xe8] sm:$0xff]
          %v1771 = vld [vmem:[%s378 + $0xf0] sm:$0xff]
          %v1772 = vld [vmem:[%s378 + $0xf8] sm:$0xff]
          %v1773 = vld [vmem:[#allocation8] sm:$0xff]
          %v1774 = vld [vmem:[#allocation8 + $0x8] sm:$0xff]
          %v1775 = vld [vmem:[#allocation8 + $0x10] sm:$0xff]
          %v1776 = vld [vmem:[#allocation8 + $0x18] sm:$0xff]
          %v1777 = vld [vmem:[#allocation8 + $0x20] sm:$0xff]
          %v1778 = vld [vmem:[#allocation8 + $0x28] sm:$0xff]
          %v1779 = vld [vmem:[#allocation8 + $0x30] sm:$0xff]
          %v1780 = vld [vmem:[#allocation8 + $0x38] sm:$0xff]
          %v1781 = vld [vmem:[#allocation8 + $0x40] sm:$0xff]
          %v1782 = vld [vmem:[#allocation8 + $0x48] sm:$0xff]
          %v1783 = vld [vmem:[#allocation8 + $0x50] sm:$0xff]
          %v1784 = vld [vmem:[#allocation8 + $0x58] sm:$0xff]
          %v1785 = vld [vmem:[#allocation8 + $0x60] sm:$0xff]
          %v1786 = vld [vmem:[#allocation8 + $0x68] sm:$0xff]
          %v1787 = vld [vmem:[#allocation8 + $0x70] sm:$0xff]
          %v1788 = vld [vmem:[#allocation8 + $0x78] sm:$0xff]
          %v1789 = vld [vmem:[#allocation9] sm:$0xff]
          %v1790 = vld [vmem:[#allocation9 + $0x8] sm:$0xff]
          %v1791 = vld [vmem:[#allocation9 + $0x10] sm:$0xff]
          %v1792 = vld [vmem:[#allocation9 + $0x18] sm:$0xff]
          %v1793 = vld [vmem:[#allocation9 + $0x20] sm:$0xff]
          %v1794 = vld [vmem:[#allocation9 + $0x28] sm:$0xff]
          %v1795 = vld [vmem:[#allocation9 + $0x30] sm:$0xff]
          %v1796 = vld [vmem:[#allocation9 + $0x38] sm:$0xff]
          %v1797 = vld [vmem:[#allocation9 + $0x40] sm:$0xff]
          %v1798 = vld [vmem:[#allocation9 + $0x48] sm:$0xff]
          %v1799 = vld [vmem:[#allocation9 + $0x50] sm:$0xff]
          %v1800 = vld [vmem:[#allocation9 + $0x58] sm:$0xff]
          %v1801 = vld [vmem:[#allocation9 + $0x60] sm:$0xff]
          %v1802 = vld [vmem:[#allocation9 + $0x68] sm:$0xff]
          %v1803 = vld [vmem:[#allocation9 + $0x70] sm:$0xff]
          %v1804 = vld [vmem:[#allocation9 + $0x78] sm:$0xff]
          %1805 = vmatprep.subr.mxu0 0.0
          %1806 = vmatpush1.msra.mxu0 %v1804
          %1807 = vmatprep.subr.mxu0 0.0
          %1808 = vmatpush1.msra.mxu0 %v1803
          %1809 = vmatprep.subr.mxu0 0.0
          %1810 = vmatpush1.msra.mxu0 %v1802
          %1811 = vmatprep.subr.mxu0 0.0
          %1812 = vmatpush1.msra.mxu0 %v1801
          %1813 = vmatprep.subr.mxu0 0.0
          %1814 = vmatpush1.msra.mxu0 %v1800
          %1815 = vmatprep.subr.mxu0 0.0
          %1816 = vmatpush1.msra.mxu0 %v1799
          %1817 = vmatprep.subr.mxu0 0.0
          %1818 = vmatpush1.msra.mxu0 %v1798
          %1819 = vmatprep.subr.mxu0 0.0
          %1820 = vmatpush1.msra.mxu0 %v1797
          %1821 = vmatprep.subr.mxu0 0.0
          %1822 = vmatpush1.msra.mxu0 %v1796
          %1823 = vmatprep.subr.mxu0 0.0
          %1824 = vmatpush1.msra.mxu0 %v1795
          %1825 = vmatprep.subr.mxu0 0.0
          %1826 = vmatpush1.msra.mxu0 %v1794
          %1827 = vmatprep.subr.mxu0 0.0
          %1828 = vmatpush1.msra.mxu0 %v1793
          %1829 = vmatprep.subr.mxu0 0.0
          %1830 = vmatpush1.msra.mxu0 %v1792
          %1831 = vmatprep.subr.mxu0 0.0
          %1832 = vmatpush1.msra.mxu0 %v1791
          %1833 = vmatprep.subr.mxu0 0.0
          %1834 = vmatpush1.msra.mxu0 %v1790
          %1835 = vmatprep.subr.mxu0 0.0
          %1836 = vmatpush1.msra.mxu0 %v1789
          %1837 = vmatprep.subr.mxu0 0.0
          %1838 = vmatpush2.msra.mxu0 0.0
          %1839 = vmatprep.subr.mxu0 0.0
          %1840 = vmatpush2.msra.mxu0 0.0
          %1841 = vmatprep.subr.mxu0 0.0
          %1842 = vmatpush2.msra.mxu0 0.0
          %1843 = vmatprep.subr.mxu0 0.0
          %1844 = vmatpush2.msra.mxu0 0.0
          %1845 = vmatprep.subr.mxu0 0.0
          %1846 = vmatpush2.msra.mxu0 0.0
          %1847 = vmatprep.subr.mxu0 0.0
          %1848 = vmatpush2.msra.mxu0 0.0
          %1849 = vmatprep.subr.mxu0 0.0
          %1850 = vmatpush2.msra.mxu0 0.0
          %1851 = vmatprep.subr.mxu0 0.0
          %1852 = vmatpush2.msra.mxu0 0.0
          %1853 = vmatprep.subr.mxu0 0.0
          %1854 = vmatpush2.msra.mxu0 0.0
          %1855 = vmatprep.subr.mxu0 0.0
          %1856 = vmatpush2.msra.mxu0 0.0
          %1857 = vmatprep.subr.mxu0 0.0
          %1858 = vmatpush2.msra.mxu0 0.0
          %1859 = vmatprep.subr.mxu0 0.0
          %1860 = vmatpush2.msra.mxu0 0.0
          %1861 = vmatprep.subr.mxu0 0.0
          %1862 = vmatpush2.msra.mxu0 0.0
          %1863 = vmatprep.subr.mxu0 0.0
          %1864 = vmatpush2.msra.mxu0 0.0
          %1865 = vmatprep.subr.mxu0 0.0
          %1866 = vmatpush2.msra.mxu0 0.0
          %1867 = vmatprep.subr.mxu0 0.0
          %1868 = vmatpush2.msra.mxu0 0.0
          %1869 = vmatprep.mubr.f32.mxu0 0.0
          %1870 = vmatmul.mubr.f32.gmra.mxu0 %v1709
          %v1871 = vpop.f32.mrf.mxu0
          %v1872 = vadd.f32 0.0, %v1871
          %v1873 = vpop.f32.mrf.mxu0
          %1874 = vmatprep.mubr.f32.mxu0 0.0
          %1875 = vmatmul.mubr.f32.gmra.mxu0 %v1710
          %v1876 = vpop.f32.mrf.mxu0
          %v1877 = vadd.f32 0.0, %v1876
          %v1878 = vpop.f32.mrf.mxu0
          %1879 = vmatprep.mubr.f32.mxu0 0.0
          %1880 = vmatmul.mubr.f32.gmra.mxu0 %v1711
          %v1881 = vpop.f32.mrf.mxu0
          %v1882 = vadd.f32 0.0, %v1881
          %v1883 = vpop.f32.mrf.mxu0
          %1884 = vmatprep.mubr.f32.mxu0 0.0
          %1885 = vmatmul.mubr.f32.gmra.mxu0 %v1712
          %v1886 = vpop.f32.mrf.mxu0
          %v1887 = vadd.f32 0.0, %v1886
          %v1888 = vpop.f32.mrf.mxu0
          %1889 = vmatprep.mubr.f32.mxu0 0.0
          %1890 = vmatmul.mubr.f32.gmra.mxu0 %v1713
          %v1891 = vpop.f32.mrf.mxu0
          %v1892 = vadd.f32 0.0, %v1891
          %v1893 = vpop.f32.mrf.mxu0
          %1894 = vmatprep.mubr.f32.mxu0 0.0
          %1895 = vmatmul.mubr.f32.gmra.mxu0 %v1714
          %v1896 = vpop.f32.mrf.mxu0
          %v1897 = vadd.f32 0.0, %v1896
          %v1898 = vpop.f32.mrf.mxu0
          %1899 = vmatprep.mubr.f32.mxu0 0.0
          %1900 = vmatmul.mubr.f32.gmra.mxu0 %v1715
          %v1901 = vpop.f32.mrf.mxu0
          %v1902 = vadd.f32 0.0, %v1901
          %v1903 = vpop.f32.mrf.mxu0
          %1904 = vmatprep.mubr.f32.mxu0 0.0
          %1905 = vmatmul.mubr.f32.gmra.mxu0 %v1716
          %v1906 = vpop.f32.mrf.mxu0
          %v1907 = vadd.f32 0.0, %v1906
          %v1908 = vpop.f32.mrf.mxu0
          %1909 = vmatprep.mubr.f32.mxu0 0.0
          %1910 = vmatmul.mubr.f32.gmra.mxu0 %v1717
          %v1911 = vpop.f32.mrf.mxu0
          %v1912 = vadd.f32 0.0, %v1911
          %v1913 = vpop.f32.mrf.mxu0
          %1914 = vmatprep.mubr.f32.mxu0 0.0
          %1915 = vmatmul.mubr.f32.gmra.mxu0 %v1718
          %v1916 = vpop.f32.mrf.mxu0
          %v1917 = vadd.f32 0.0, %v1916
          %v1918 = vpop.f32.mrf.mxu0
          %1919 = vmatprep.mubr.f32.mxu0 0.0
          %1920 = vmatmul.mubr.f32.gmra.mxu0 %v1719
          %v1921 = vpop.f32.mrf.mxu0
          %v1922 = vadd.f32 0.0, %v1921
          %v1923 = vpop.f32.mrf.mxu0
          %1924 = vmatprep.mubr.f32.mxu0 0.0
          %1925 = vmatmul.mubr.f32.gmra.mxu0 %v1720
          %v1926 = vpop.f32.mrf.mxu0
          %v1927 = vadd.f32 0.0, %v1926
          %v1928 = vpop.f32.mrf.mxu0
          %1929 = vmatprep.mubr.f32.mxu0 0.0
          %1930 = vmatmul.mubr.f32.gmra.mxu0 %v1721
          %v1931 = vpop.f32.mrf.mxu0
          %v1932 = vadd.f32 0.0, %v1931
          %v1933 = vpop.f32.mrf.mxu0
          %1934 = vmatprep.mubr.f32.mxu0 0.0
          %1935 = vmatmul.mubr.f32.gmra.mxu0 %v1722
          %v1936 = vpop.f32.mrf.mxu0
          %v1937 = vadd.f32 0.0, %v1936
          %v1938 = vpop.f32.mrf.mxu0
          %1939 = vmatprep.mubr.f32.mxu0 0.0
          %1940 = vmatmul.mubr.f32.gmra.mxu0 %v1723
          %v1941 = vpop.f32.mrf.mxu0
          %v1942 = vadd.f32 0.0, %v1941
          %v1943 = vpop.f32.mrf.mxu0
          %1944 = vmatprep.mubr.f32.mxu0 0.0
          %1945 = vmatmul.mubr.f32.gmra.mxu0 %v1724
          %v1946 = vpop.f32.mrf.mxu0
          %v1947 = vadd.f32 0.0, %v1946
          %v1948 = vpop.f32.mrf.mxu0
          %1949 = vmatprep.mubr.f32.mxu0 0.0
          %1950 = vmatmul.mubr.f32.gmra.mxu0 %v1725
          %v1951 = vpop.f32.mrf.mxu0
          %v1952 = vadd.f32 0.0, %v1951
          %v1953 = vpop.f32.mrf.mxu0
          %1954 = vmatprep.mubr.f32.mxu0 0.0
          %1955 = vmatmul.mubr.f32.gmra.mxu0 %v1726
          %v1956 = vpop.f32.mrf.mxu0
          %v1957 = vadd.f32 0.0, %v1956
          %v1958 = vpop.f32.mrf.mxu0
          %1959 = vmatprep.mubr.f32.mxu0 0.0
          %1960 = vmatmul.mubr.f32.gmra.mxu0 %v1727
          %v1961 = vpop.f32.mrf.mxu0
          %v1962 = vadd.f32 0.0, %v1961
          %v1963 = vpop.f32.mrf.mxu0
          %1964 = vmatprep.mubr.f32.mxu0 0.0
          %1965 = vmatmul.mubr.f32.gmra.mxu0 %v1728
          %v1966 = vpop.f32.mrf.mxu0
          %v1967 = vadd.f32 0.0, %v1966
          %v1968 = vpop.f32.mrf.mxu0
          %1969 = vmatprep.mubr.f32.mxu0 0.0
          %1970 = vmatmul.mubr.f32.gmra.mxu0 %v1729
          %v1971 = vpop.f32.mrf.mxu0
          %v1972 = vadd.f32 0.0, %v1971
          %v1973 = vpop.f32.mrf.mxu0
          %1974 = vmatprep.mubr.f32.mxu0 0.0
          %1975 = vmatmul.mubr.f32.gmra.mxu0 %v1730
          %v1976 = vpop.f32.mrf.mxu0
          %v1977 = vadd.f32 0.0, %v1976
          %v1978 = vpop.f32.mrf.mxu0
          %1979 = vmatprep.mubr.f32.mxu0 0.0
          %1980 = vmatmul.mubr.f32.gmra.mxu0 %v1731
          %v1981 = vpop.f32.mrf.mxu0
          %v1982 = vadd.f32 0.0, %v1981
          %v1983 = vpop.f32.mrf.mxu0
          %1984 = vmatprep.mubr.f32.mxu0 0.0
          %1985 = vmatmul.mubr.f32.gmra.mxu0 %v1732
          %v1986 = vpop.f32.mrf.mxu0
          %v1987 = vadd.f32 0.0, %v1986
          %v1988 = vpop.f32.mrf.mxu0
          %1989 = vmatprep.mubr.f32.mxu0 0.0
          %1990 = vmatmul.mubr.f32.gmra.mxu0 %v1733
          %v1991 = vpop.f32.mrf.mxu0
          %v1992 = vadd.f32 0.0, %v1991
          %v1993 = vpop.f32.mrf.mxu0
          %1994 = vmatprep.mubr.f32.mxu0 0.0
          %1995 = vmatmul.mubr.f32.gmra.mxu0 %v1734
          %v1996 = vpop.f32.mrf.mxu0
          %v1997 = vadd.f32 0.0, %v1996
          %v1998 = vpop.f32.mrf.mxu0
          %1999 = vmatprep.mubr.f32.mxu0 0.0
          %2000 = vmatmul.mubr.f32.gmra.mxu0 %v1735
          %v2001 = vpop.f32.mrf.mxu0
          %v2002 = vadd.f32 0.0, %v2001
          %v2003 = vpop.f32.mrf.mxu0
          %2004 = vmatprep.mubr.f32.mxu0 0.0
          %2005 = vmatmul.mubr.f32.gmra.mxu0 %v1736
          %v2006 = vpop.f32.mrf.mxu0
          %v2007 = vadd.f32 0.0, %v2006
          %v2008 = vpop.f32.mrf.mxu0
          %2009 = vmatprep.mubr.f32.mxu0 0.0
          %2010 = vmatmul.mubr.f32.gmra.mxu0 %v1737
          %v2011 = vpop.f32.mrf.mxu0
          %v2012 = vadd.f32 0.0, %v2011
          %v2013 = vpop.f32.mrf.mxu0
          %2014 = vmatprep.mubr.f32.mxu0 0.0
          %2015 = vmatmul.mubr.f32.gmra.mxu0 %v1738
          %v2016 = vpop.f32.mrf.mxu0
          %v2017 = vadd.f32 0.0, %v2016
          %v2018 = vpop.f32.mrf.mxu0
          %2019 = vmatprep.mubr.f32.mxu0 0.0
          %2020 = vmatmul.mubr.f32.gmra.mxu0 %v1739
          %v2021 = vpop.f32.mrf.mxu0
          %v2022 = vadd.f32 0.0, %v2021
          %v2023 = vpop.f32.mrf.mxu0
          %2024 = vmatprep.mubr.f32.mxu0 0.0
          %2025 = vmatmul.mubr.f32.gmra.mxu0 %v1740
          %v2026 = vpop.f32.mrf.mxu0
          %v2027 = vadd.f32 0.0, %v2026
          %v2028 = vpop.f32.mrf.mxu0
          %2029 = vdwg.mxu0
          %2030 = vmatprep.subr.mxu0 0.0
          %2031 = vmatpush1.msra.mxu0 %v1788
          %2032 = vmatprep.subr.mxu0 0.0
          %2033 = vmatpush1.msra.mxu0 %v1787
          %2034 = vmatprep.subr.mxu0 0.0
          %2035 = vmatpush1.msra.mxu0 %v1786
          %2036 = vmatprep.subr.mxu0 0.0
          %2037 = vmatpush1.msra.mxu0 %v1785
          %2038 = vmatprep.subr.mxu0 0.0
          %2039 = vmatpush1.msra.mxu0 %v1784
          %2040 = vmatprep.subr.mxu0 0.0
          %2041 = vmatpush1.msra.mxu0 %v1783
          %2042 = vmatprep.subr.mxu0 0.0
          %2043 = vmatpush1.msra.mxu0 %v1782
          %2044 = vmatprep.subr.mxu0 0.0
          %2045 = vmatpush1.msra.mxu0 %v1781
          %2046 = vmatprep.subr.mxu0 0.0
          %2047 = vmatpush1.msra.mxu0 %v1780
          %2048 = vmatprep.subr.mxu0 0.0
          %2049 = vmatpush1.msra.mxu0 %v1779
          %2050 = vmatprep.subr.mxu0 0.0
          %2051 = vmatpush1.msra.mxu0 %v1778
          %2052 = vmatprep.subr.mxu0 0.0
          %2053 = vmatpush1.msra.mxu0 %v1777
          %2054 = vmatprep.subr.mxu0 0.0
          %2055 = vmatpush1.msra.mxu0 %v1776
          %2056 = vmatprep.subr.mxu0 0.0
          %2057 = vmatpush1.msra.mxu0 %v1775
          %2058 = vmatprep.subr.mxu0 0.0
          %2059 = vmatpush1.msra.mxu0 %v1774
          %2060 = vmatprep.subr.mxu0 0.0
          %2061 = vmatpush1.msra.mxu0 %v1773
          %2062 = vmatprep.subr.mxu0 0.0
          %2063 = vmatpush2.msra.mxu0 0.0
          %2064 = vmatprep.subr.mxu0 0.0
          %2065 = vmatpush2.msra.mxu0 0.0
          %2066 = vmatprep.subr.mxu0 0.0
          %2067 = vmatpush2.msra.mxu0 0.0
          %2068 = vmatprep.subr.mxu0 0.0
          %2069 = vmatpush2.msra.mxu0 0.0
          %2070 = vmatprep.subr.mxu0 0.0
          %2071 = vmatpush2.msra.mxu0 0.0
          %2072 = vmatprep.subr.mxu0 0.0
          %2073 = vmatpush2.msra.mxu0 0.0
          %2074 = vmatprep.subr.mxu0 0.0
          %2075 = vmatpush2.msra.mxu0 0.0
          %2076 = vmatprep.subr.mxu0 0.0
          %2077 = vmatpush2.msra.mxu0 0.0
          %2078 = vmatprep.subr.mxu0 0.0
          %2079 = vmatpush2.msra.mxu0 0.0
          %2080 = vmatprep.subr.mxu0 0.0
          %2081 = vmatpush2.msra.mxu0 0.0
          %2082 = vmatprep.subr.mxu0 0.0
          %2083 = vmatpush2.msra.mxu0 0.0
          %2084 = vmatprep.subr.mxu0 0.0
          %2085 = vmatpush2.msra.mxu0 0.0
          %2086 = vmatprep.subr.mxu0 0.0
          %2087 = vmatpush2.msra.mxu0 0.0
          %2088 = vmatprep.subr.mxu0 0.0
          %2089 = vmatpush2.msra.mxu0 0.0
          %2090 = vmatprep.subr.mxu0 0.0
          %2091 = vmatpush2.msra.mxu0 0.0
          %2092 = vmatprep.subr.mxu0 0.0
          %2093 = vmatpush2.msra.mxu0 0.0
          %2094 = vmatprep.mubr.f32.mxu0 0.0
          %2095 = vmatmul.mubr.f32.gmra.mxu0 %v1741
          %v2096 = vpop.f32.mrf.mxu0
          %v2097 = vadd.f32 %v1872, %v2096
          %v2098 = vpop.f32.mrf.mxu0
          %2099 = vmatprep.mubr.f32.mxu0 0.0
          %2100 = vmatmul.mubr.f32.gmra.mxu0 %v1742
          %v2101 = vpop.f32.mrf.mxu0
          %v2102 = vadd.f32 %v1877, %v2101
          %v2103 = vpop.f32.mrf.mxu0
          %2104 = vmatprep.mubr.f32.mxu0 0.0
          %2105 = vmatmul.mubr.f32.gmra.mxu0 %v1743
          %v2106 = vpop.f32.mrf.mxu0
          %v2107 = vadd.f32 %v1882, %v2106
          %v2108 = vpop.f32.mrf.mxu0
          %2109 = vmatprep.mubr.f32.mxu0 0.0
          %2110 = vmatmul.mubr.f32.gmra.mxu0 %v1744
          %v2111 = vpop.f32.mrf.mxu0
          %v2112 = vadd.f32 %v1887, %v2111
          %v2113 = vpop.f32.mrf.mxu0
          %2114 = vmatprep.mubr.f32.mxu0 0.0
          %2115 = vmatmul.mubr.f32.gmra.mxu0 %v1745
          %v2116 = vpop.f32.mrf.mxu0
          %v2117 = vadd.f32 %v1892, %v2116
          %v2118 = vpop.f32.mrf.mxu0
          %2119 = vmatprep.mubr.f32.mxu0 0.0
          %2120 = vmatmul.mubr.f32.gmra.mxu0 %v1746
          %v2121 = vpop.f32.mrf.mxu0
          %v2122 = vadd.f32 %v1897, %v2121
          %v2123 = vpop.f32.mrf.mxu0
          %2124 = vmatprep.mubr.f32.mxu0 0.0
          %2125 = vmatmul.mubr.f32.gmra.mxu0 %v1747
          %v2126 = vpop.f32.mrf.mxu0
          %v2127 = vadd.f32 %v1902, %v2126
          %v2128 = vpop.f32.mrf.mxu0
          %2129 = vmatprep.mubr.f32.mxu0 0.0
          %2130 = vmatmul.mubr.f32.gmra.mxu0 %v1748
          %v2131 = vpop.f32.mrf.mxu0
          %v2132 = vadd.f32 %v1907, %v2131
          %v2133 = vpop.f32.mrf.mxu0
          %2134 = vmatprep.mubr.f32.mxu0 0.0
          %2135 = vmatmul.mubr.f32.gmra.mxu0 %v1749
          %v2136 = vpop.f32.mrf.mxu0
          %v2137 = vadd.f32 %v1912, %v2136
          %v2138 = vpop.f32.mrf.mxu0
          %2139 = vmatprep.mubr.f32.mxu0 0.0
          %2140 = vmatmul.mubr.f32.gmra.mxu0 %v1750
          %v2141 = vpop.f32.mrf.mxu0
          %v2142 = vadd.f32 %v1917, %v2141
          %v2143 = vpop.f32.mrf.mxu0
          %2144 = vmatprep.mubr.f32.mxu0 0.0
          %2145 = vmatmul.mubr.f32.gmra.mxu0 %v1751
          %v2146 = vpop.f32.mrf.mxu0
          %v2147 = vadd.f32 %v1922, %v2146
          %v2148 = vpop.f32.mrf.mxu0
          %2149 = vmatprep.mubr.f32.mxu0 0.0
          %2150 = vmatmul.mubr.f32.gmra.mxu0 %v1752
          %v2151 = vpop.f32.mrf.mxu0
          %v2152 = vadd.f32 %v1927, %v2151
          %v2153 = vpop.f32.mrf.mxu0
          %2154 = vmatprep.mubr.f32.mxu0 0.0
          %2155 = vmatmul.mubr.f32.gmra.mxu0 %v1753
          %v2156 = vpop.f32.mrf.mxu0
          %v2157 = vadd.f32 %v1932, %v2156
          %v2158 = vpop.f32.mrf.mxu0
          %2159 = vmatprep.mubr.f32.mxu0 0.0
          %2160 = vmatmul.mubr.f32.gmra.mxu0 %v1754
          %v2161 = vpop.f32.mrf.mxu0
          %v2162 = vadd.f32 %v1937, %v2161
          %v2163 = vpop.f32.mrf.mxu0
          %2164 = vmatprep.mubr.f32.mxu0 0.0
          %2165 = vmatmul.mubr.f32.gmra.mxu0 %v1755
          %v2166 = vpop.f32.mrf.mxu0
          %v2167 = vadd.f32 %v1942, %v2166
          %v2168 = vpop.f32.mrf.mxu0
          %2169 = vmatprep.mubr.f32.mxu0 0.0
          %2170 = vmatmul.mubr.f32.gmra.mxu0 %v1756
          %v2171 = vpop.f32.mrf.mxu0
          %v2172 = vadd.f32 %v1947, %v2171
          %v2173 = vpop.f32.mrf.mxu0
          %2174 = vmatprep.mubr.f32.mxu0 0.0
          %2175 = vmatmul.mubr.f32.gmra.mxu0 %v1757
          %v2176 = vpop.f32.mrf.mxu0
          %v2177 = vadd.f32 %v1952, %v2176
          %v2178 = vpop.f32.mrf.mxu0
          %2179 = vmatprep.mubr.f32.mxu0 0.0
          %2180 = vmatmul.mubr.f32.gmra.mxu0 %v1758
          %v2181 = vpop.f32.mrf.mxu0
          %v2182 = vadd.f32 %v1957, %v2181
          %v2183 = vpop.f32.mrf.mxu0
          %2184 = vmatprep.mubr.f32.mxu0 0.0
          %2185 = vmatmul.mubr.f32.gmra.mxu0 %v1759
          %v2186 = vpop.f32.mrf.mxu0
          %v2187 = vadd.f32 %v1962, %v2186
          %v2188 = vpop.f32.mrf.mxu0
          %2189 = vmatprep.mubr.f32.mxu0 0.0
          %2190 = vmatmul.mubr.f32.gmra.mxu0 %v1760
          %v2191 = vpop.f32.mrf.mxu0
          %v2192 = vadd.f32 %v1967, %v2191
          %v2193 = vpop.f32.mrf.mxu0
          %2194 = vmatprep.mubr.f32.mxu0 0.0
          %2195 = vmatmul.mubr.f32.gmra.mxu0 %v1761
          %v2196 = vpop.f32.mrf.mxu0
          %v2197 = vadd.f32 %v1972, %v2196
          %v2198 = vpop.f32.mrf.mxu0
          %2199 = vmatprep.mubr.f32.mxu0 0.0
          %2200 = vmatmul.mubr.f32.gmra.mxu0 %v1762
          %v2201 = vpop.f32.mrf.mxu0
          %v2202 = vadd.f32 %v1977, %v2201
          %v2203 = vpop.f32.mrf.mxu0
          %2204 = vmatprep.mubr.f32.mxu0 0.0
          %2205 = vmatmul.mubr.f32.gmra.mxu0 %v1763
          %v2206 = vpop.f32.mrf.mxu0
          %v2207 = vadd.f32 %v1982, %v2206
          %v2208 = vpop.f32.mrf.mxu0
          %2209 = vmatprep.mubr.f32.mxu0 0.0
          %2210 = vmatmul.mubr.f32.gmra.mxu0 %v1764
          %v2211 = vpop.f32.mrf.mxu0
          %v2212 = vadd.f32 %v1987, %v2211
          %v2213 = vpop.f32.mrf.mxu0
          %2214 = vmatprep.mubr.f32.mxu0 0.0
          %2215 = vmatmul.mubr.f32.gmra.mxu0 %v1765
          %v2216 = vpop.f32.mrf.mxu0
          %v2217 = vadd.f32 %v1992, %v2216
          %v2218 = vpop.f32.mrf.mxu0
          %2219 = vmatprep.mubr.f32.mxu0 0.0
          %2220 = vmatmul.mubr.f32.gmra.mxu0 %v1766
          %v2221 = vpop.f32.mrf.mxu0
          %v2222 = vadd.f32 %v1997, %v2221
          %v2223 = vpop.f32.mrf.mxu0
          %2224 = vmatprep.mubr.f32.mxu0 0.0
          %2225 = vmatmul.mubr.f32.gmra.mxu0 %v1767
          %v2226 = vpop.f32.mrf.mxu0
          %v2227 = vadd.f32 %v2002, %v2226
          %v2228 = vpop.f32.mrf.mxu0
          %2229 = vmatprep.mubr.f32.mxu0 0.0
          %2230 = vmatmul.mubr.f32.gmra.mxu0 %v1768
          %v2231 = vpop.f32.mrf.mxu0
          %v2232 = vadd.f32 %v2007, %v2231
          %v2233 = vpop.f32.mrf.mxu0
          %2234 = vmatprep.mubr.f32.mxu0 0.0
          %2235 = vmatmul.mubr.f32.gmra.mxu0 %v1769
          %v2236 = vpop.f32.mrf.mxu0
          %v2237 = vadd.f32 %v2012, %v2236
          %v2238 = vpop.f32.mrf.mxu0
          %2239 = vmatprep.mubr.f32.mxu0 0.0
          %2240 = vmatmul.mubr.f32.gmra.mxu0 %v1770
          %v2241 = vpop.f32.mrf.mxu0
          %v2242 = vadd.f32 %v2017, %v2241
          %v2243 = vpop.f32.mrf.mxu0
          %2244 = vmatprep.mubr.f32.mxu0 0.0
          %2245 = vmatmul.mubr.f32.gmra.mxu0 %v1771
          %v2246 = vpop.f32.mrf.mxu0
          %v2247 = vadd.f32 %v2022, %v2246
          %v2248 = vpop.f32.mrf.mxu0
          %2249 = vmatprep.mubr.f32.mxu0 0.0
          %2250 = vmatmul.mubr.f32.gmra.mxu0 %v1772
          %v2251 = vpop.f32.mrf.mxu0
          %v2252 = vadd.f32 %v2027, %v2251
          %v2253 = vpop.f32.mrf.mxu0
          %2254 = vdwg.mxu0
          %v2255 = vmax.f32 %v2097, 0.0
          %v2256 = vmax.f32 %v2102, 0.0
          %v2257 = vmax.f32 %v2107, 0.0
          %v2258 = vmax.f32 %v2112, 0.0
          %v2259 = vmax.f32 %v2117, 0.0
          %v2260 = vmax.f32 %v2122, 0.0
          %v2261 = vmax.f32 %v2127, 0.0
          %v2262 = vmax.f32 %v2132, 0.0
          %v2263 = vmax.f32 %v2137, 0.0
          %v2264 = vmax.f32 %v2142, 0.0
          %v2265 = vmax.f32 %v2147, 0.0
          %v2266 = vmax.f32 %v2152, 0.0
          %v2267 = vmax.f32 %v2157, 0.0
          %v2268 = vmax.f32 %v2162, 0.0
          %v2269 = vmax.f32 %v2167, 0.0
          %v2270 = vmax.f32 %v2172, 0.0
          %v2271 = vmax.f32 %v2177, 0.0
          %v2272 = vmax.f32 %v2182, 0.0
          %v2273 = vmax.f32 %v2187, 0.0
          %v2274 = vmax.f32 %v2192, 0.0
          %v2275 = vmax.f32 %v2197, 0.0
          %v2276 = vmax.f32 %v2202, 0.0
          %v2277 = vmax.f32 %v2207, 0.0
          %v2278 = vmax.f32 %v2212, 0.0
          %v2279 = vmax.f32 %v2217, 0.0
          %v2280 = vmax.f32 %v2222, 0.0
          %v2281 = vmax.f32 %v2227, 0.0
          %v2282 = vmax.f32 %v2232, 0.0
          %v2283 = vmax.f32 %v2237, 0.0
          %v2284 = vmax.f32 %v2242, 0.0
          %v2285 = vmax.f32 %v2247, 0.0
          %v2286 = vmax.f32 %v2252, 0.0
          %2287 = vst [vmem:[%s370] sm:$0xff] %v2255
          %2288 = vst [vmem:[%s370 + $0x8] sm:$0xff] %v2256
          %2289 = vst [vmem:[%s370 + $0x10] sm:$0xff] %v2257
          %2290 = vst [vmem:[%s370 + $0x18] sm:$0xff] %v2258
          %2291 = vst [vmem:[%s370 + $0x20] sm:$0xff] %v2259
          %2292 = vst [vmem:[%s370 + $0x28] sm:$0xff] %v2260
          %2293 = vst [vmem:[%s370 + $0x30] sm:$0xff] %v2261
          %2294 = vst [vmem:[%s370 + $0x38] sm:$0xff] %v2262
          %2295 = vst [vmem:[%s370 + $0x40] sm:$0xff] %v2263
          %2296 = vst [vmem:[%s370 + $0x48] sm:$0xff] %v2264
          %2297 = vst [vmem:[%s370 + $0x50] sm:$0xff] %v2265
          %2298 = vst [vmem:[%s370 + $0x58] sm:$0xff] %v2266
          %2299 = vst [vmem:[%s370 + $0x60] sm:$0xff] %v2267
          %2300 = vst [vmem:[%s370 + $0x68] sm:$0xff] %v2268
          %2301 = vst [vmem:[%s370 + $0x70] sm:$0xff] %v2269
          %2302 = vst [vmem:[%s370 + $0x78] sm:$0xff] %v2270
          %2303 = vst [vmem:[%s370 + $0x80] sm:$0xff] %v2271
          %2304 = vst [vmem:[%s370 + $0x88] sm:$0xff] %v2272
          %2305 = vst [vmem:[%s370 + $0x90] sm:$0xff] %v2273
          %2306 = vst [vmem:[%s370 + $0x98] sm:$0xff] %v2274
          %2307 = vst [vmem:[%s370 + $0xa0] sm:$0xff] %v2275
          %2308 = vst [vmem:[%s370 + $0xa8] sm:$0xff] %v2276
          %2309 = vst [vmem:[%s370 + $0xb0] sm:$0xff] %v2277
          %2310 = vst [vmem:[%s370 + $0xb8] sm:$0xff] %v2278
          %2311 = vst [vmem:[%s370 + $0xc0] sm:$0xff] %v2279
          %2312 = vst [vmem:[%s370 + $0xc8] sm:$0xff] %v2280
          %2313 = vst [vmem:[%s370 + $0xd0] sm:$0xff] %v2281
          %2314 = vst [vmem:[%s370 + $0xd8] sm:$0xff] %v2282
          %2315 = vst [vmem:[%s370 + $0xe0] sm:$0xff] %v2283
          %2316 = vst [vmem:[%s370 + $0xe8] sm:$0xff] %v2284
          %2317 = vst [vmem:[%s370 + $0xf0] sm:$0xff] %v2285
          %2318 = vst [vmem:[%s370 + $0xf8] sm:$0xff] %v2286
        $region68: #{tpu_custom_call.1} parent=43 // pred_fallthru
          _
        %s2319 = sand.u32 %s193, 1
        %s2320 = scalar_lea.sflag [#allocation5], %s2319
        %s2321 = sand.u32 %s193, 1
        %s2322 = smul.addr %s2321, 256
        %s2323 = scalar_lea.vmem [#allocation11], %s2322
        // Predicated region
        $region69: #{tpu_custom_call.1} parent=43 // pred_check
          %p2324 = pneg %p203
        $region70: #{tpu_custom_call.1} parent=43 // pred_check_branch
          %2326 = sbr.rel (%p2324) target = $region72
        $region71: #{tpu_custom_call.1} parent=43 // pred_region
          %s2327 = smul.u32 32, %s29
          %s2329 = ssub.s32 4096, 4096
          %2330 = vsyncadd %s2320, %s2329
          %s2331 = smul.addr %s2327, 128
          %s2332 = scalar_lea.hbm %s6, %s2331
          %s2333 = sshll.u32 %s2323, 4
          %s2334 = int_to_ptr.vmem [resolvable:$true] %s2333
          %2339 = dma.vmem_to_hbm [thread:$0]  %s2334, 4096, %s2332, %s2320, 128, 128, 8
        $region72: #{tpu_custom_call.1} parent=43 // pred_fallthru
          _
      $region44: #{tpu_custom_call.1} parent=5 // pred_fallthru
        _
      %p2340 = scmp.le.s32.totalorder 2, %s20
      // Predicated region
      $region73: #{tpu_custom_call.1} parent=5 // pred_check
        %p2341 = pneg %p2340
      $region74: #{tpu_custom_call.1} parent=5 // pred_check_branch
        %2343 = sbr.rel (%p2341) target = $region76
      $region75: #{tpu_custom_call.1} parent=5 // pred_region
        %s2344 = ssub.s32 %s20, 2
        // Predicated region
        $region77: #{tpu_custom_call.1} parent=75 // pred_check
          %p2345 = pneg %p209
        $region78: #{tpu_custom_call.1} parent=75 // pred_check_branch
          %2347 = sbr.rel (%p2345) target = $region80
        $region79: #{tpu_custom_call.1} parent=75 // pred_region
          %s2348 = sand.u32 %s194, 1
          %s2349 = scalar_lea.sflag [#allocation5], %s2348
          %s2350 = sand.u32 %s194, 1
          %s2351 = smul.addr %s2350, 256
          %s2352 = scalar_lea.vmem [#allocation11], %s2351
          %2353 = dma.done %s2349, 4096
        $region80: #{tpu_custom_call.1} parent=75 // pred_fallthru
          _
      $region76: #{tpu_custom_call.1} parent=5 // pred_fallthru
        _
    $region6: #{tpu_custom_call.1} parent=1 // loop_footer
      %s24 = sadd.s32 1, %s20
    $region7: #{tpu_custom_call.1} parent=1 // loop_footer_branch
      %19 = sbr.rel target = $region3
    $region8: #{tpu_custom_call.1} parent=1 // loop_exit
      _
    %2354 = vsyncpa [#allocation4], 1
    %s2355 = scalar_lea.sflag [#allocation4], 1
    %2356 = vsyncpa %s2355, 1
    %2357 = vsyncpa [#allocation7], 1
    %2358 = vsyncpa [#allocation10], 1
    %2359 = vsyncpa [#allocation5], 1
    %s2360 = scalar_lea.sflag [#allocation5], 1
    %2361 = vsyncpa %s2360, 1

</llo_original>
